<compile_context>
chip_gen: v7x
topology: tpu7x:2x2x1
jax: 0.10.0
libtpu: 0.0.40
codegen_flags: <defaults>
</compile_context>

<pallas_src>
import jax
import jax.numpy as jnp
import numpy as np
from jax import lax
from jax.experimental import pallas as pl
from jax.experimental.pallas import tpu as pltpu

_BN_EPS = 1e-5
_LANE = 128
_SUBLANE = 8
_ROW_TILE_TARGET = 256           # output positions per grid step (multiple of 8)
_VMEM_LIMIT = 48 * 1024 * 1024   # leaves headroom below v7x's 64 MiB physical VMEM


def _round_up(x, m):
    return (x + m - 1) // m * m


# ---------------------------------------------------------------------------
# Kernel 1: conv-as-GEMM.  One wide bf16 contraction per row tile (f32 accum),
# + conv bias, plus per-tile per-channel sum / sum-of-squares partials for the
# two-pass training-mode BatchNorm.
# ---------------------------------------------------------------------------
def _conv_gemm_kernel(p_ref, w_ref, b_ref, y_ref, stats_ref):
    # p_ref: (TM, Kp) bf16   w_ref: (Kp, Cp) bf16 (VMEM-resident)   b_ref: (1, Cp) f32
    y = jnp.dot(p_ref[...], w_ref[...], preferred_element_type=jnp.float32)
    y = y + b_ref[...]                                   # conv bias (broadcast)
    y_ref[...] = y.astype(y_ref.dtype)

    s = jnp.sum(y, axis=0, keepdims=True)                # (1, Cp) per-tile sum
    ss = jnp.sum(y * y, axis=0, keepdims=True)           # (1, Cp) per-tile sum of squares
    pad = jnp.zeros((_SUBLANE - 2, y.shape[1]), jnp.float32)
    stats_ref[...] = jnp.concatenate([s, ss, pad], axis=0).reshape(stats_ref.shape)


def _conv_gemm(patches, w_slab, bias_row, *, tm):
    """patches (NPp, Kp) bf16; w_slab (Kp, Cp) bf16; bias_row (1, Cp) f32.
    Returns conv output (NPp, Cp) f32 and per-tile stats (nt, 8, Cp) f32."""
    npp, kp = patches.shape
    cp = w_slab.shape[1]
    nt = npp // tm
    return pl.pallas_call(
        _conv_gemm_kernel,
        out_shape=(
            jax.ShapeDtypeStruct((npp, cp), jnp.float32),
            jax.ShapeDtypeStruct((nt, _SUBLANE, cp), jnp.float32),
        ),
        grid_spec=pltpu.PrefetchScalarGridSpec(
            num_scalar_prefetch=0,
            grid=(nt,),
            in_specs=[
                pl.BlockSpec((tm, kp), lambda t: (t, 0)),        # patch row tile
                pl.BlockSpec((kp, cp), lambda t: (0, 0)),        # weight slab (resident)
                pl.BlockSpec((1, cp), lambda t: (0, 0)),         # bias
            ],
            out_specs=[
                pl.BlockSpec((tm, cp), lambda t: (t, 0)),        # conv output tile
                pl.BlockSpec((1, _SUBLANE, cp), lambda t: (t, 0, 0)),  # BN partials
            ],
        ),
        compiler_params=pltpu.CompilerParams(
            dimension_semantics=("parallel",),
            vmem_limit_bytes=_VMEM_LIMIT,
        ),
    )(patches, w_slab, bias_row)


# ---------------------------------------------------------------------------
# Kernel 2: per-tile BN affine (scale/shift) + optional residual + optional ReLU.
# ---------------------------------------------------------------------------
def _make_bn_apply_kernel(add_residual, do_relu):
    def kernel(*refs):
        if add_residual:
            y_ref, sc_ref, sh_ref, r_ref, o_ref = refs
        else:
            y_ref, sc_ref, sh_ref, o_ref = refs
        y = y_ref[...] * sc_ref[...] + sh_ref[...]
        if add_residual:
            y = y + r_ref[...]
        if do_relu:
            y = jnp.maximum(y, 0.0)
        o_ref[...] = y.astype(o_ref.dtype)
    return kernel


def _bn_apply(y, scale_row, shift_row, residual, *, do_relu, tm):
    npp, cp = y.shape
    nt = npp // tm
    add_res = residual is not None
    in_specs = [
        pl.BlockSpec((tm, cp), lambda t: (t, 0)),
        pl.BlockSpec((1, cp), lambda t: (0, 0)),
        pl.BlockSpec((1, cp), lambda t: (0, 0)),
    ]
    args = [y, scale_row, shift_row]
    if add_res:
        # residual gets a per-row-tile spec (same index map as the output)
        in_specs.append(pl.BlockSpec((tm, cp), lambda t: (t, 0)))
        args.append(residual)
    return pl.pallas_call(
        _make_bn_apply_kernel(add_res, do_relu),
        out_shape=jax.ShapeDtypeStruct((npp, cp), jnp.float32),
        grid_spec=pltpu.PrefetchScalarGridSpec(
            num_scalar_prefetch=0,
            grid=(nt,),
            in_specs=in_specs,
            out_specs=pl.BlockSpec((tm, cp), lambda t: (t, 0)),
        ),
        compiler_params=pltpu.CompilerParams(
            dimension_semantics=("parallel",),
            vmem_limit_bytes=_VMEM_LIMIT,
        ),
    )(*args)


# ---------------------------------------------------------------------------
# Tiny global reduce for two-pass BN (O(C) work, done in plain JAX).
# Zero-padded patch rows contribute exactly `bias` to the conv output, so their
# contribution is subtracted to recover the true N*H*W population statistics.
# ---------------------------------------------------------------------------
def _bn_scale_shift(stats, bias_p, gamma_p, beta_p, n_valid, n_pad):
    s = jnp.sum(stats[:, 0, :], axis=0) - n_pad * bias_p
    ss = jnp.sum(stats[:, 1, :], axis=0) - n_pad * bias_p * bias_p
    mean = s / n_valid
    var = jnp.maximum(ss / n_valid - mean * mean, 0.0)
    inv = lax.rsqrt(var + _BN_EPS)
    scale = gamma_p * inv
    shift = beta_p - mean * scale
    return scale.reshape(1, -1), shift.reshape(1, -1)


# ---------------------------------------------------------------------------
# Wrapper-side plumbing: im2col, weight reordering, zero-padding.
# TODO(synk): replace the HBM im2col (K2x input replication) with an in-kernel halo
# DMA of the raw NHWC tile (memory_space=pl.ANY + pltpu.make_async_copy) and build the
# shifted operands from the resident VMEM buffer — cuts conv input HBM traffic ~9x.
# ---------------------------------------------------------------------------
def _im2col(x_nhwc, kh, kw, stride, padding):
    n, h, w, c = x_nhwc.shape
    xp = jnp.pad(x_nhwc, ((0, 0), (padding, padding), (padding, padding), (0, 0)))
    ho = (h + 2 * padding - kh) // stride + 1
    wo = (w + 2 * padding - kw) // stride + 1
    taps = []
    for i in range(kh):
        for j in range(kw):
            taps.append(xp[:, i:i + stride * (ho - 1) + 1:stride,
                              j:j + stride * (wo - 1) + 1:stride, :])
    patches = jnp.concatenate(taps, axis=-1).reshape(n * ho * wo, kh * kw * c)
    return patches, ho, wo


def _w_to_gemm(w):  # (Cout, Cin, KH, KW) -> (KH*KW*Cin, Cout), matches im2col order
    cout, cin, kh, kw = w.shape
    return jnp.transpose(w, (2, 3, 1, 0)).reshape(kh * kw * cin, cout)


def _pad2d(a, rows, cols):
    r, c = a.shape
    return jnp.pad(a, ((0, rows - r), (0, cols - c)))


def _pad1d(v, cols):
    return jnp.pad(v, (0, cols - v.shape[0]))


def _init_conv(key, cout, cin, kh, kw):
    kw_, kb_ = jax.random.split(key)
    bound = 1.0 / float(np.sqrt(cin * kh * kw))
    w = jax.random.uniform(kw_, (cout, cin, kh, kw), jnp.float32, -bound, bound)
    b = jax.random.uniform(kb_, (cout,), jnp.float32, -bound, bound)
    return w, b


class ResNetModelPallas:
    """Mirror of the PyTorch ResNetModel (fresh module => training-mode BatchNorm)."""

    def __init__(self, input_channels, out_channels, use_1x1conv=False, stride=1,
                 key=None):
        if key is None:
            key = jax.random.PRNGKey(0)
        k1, k2, k3 = jax.random.split(key, 3)
        self.stride = stride
        self.use_1x1conv = use_1x1conv
        self.cin, self.cout = input_channels, out_channels

        self.w1, self.b1 = _init_conv(k1, out_channels, input_channels, 3, 3)
        self.w2, self.b2 = _init_conv(k2, out_channels, out_channels, 3, 3)
        if use_1x1conv:
            self.w3, self.b3 = _init_conv(k3, out_channels, input_channels, 1, 1)
        else:
            self.w3 = self.b3 = None
        # BatchNorm2d affine params (PyTorch defaults)
        self.g1 = jnp.ones((out_channels,), jnp.float32)
        self.bt1 = jnp.zeros((out_channels,), jnp.float32)
        self.g2 = jnp.ones((out_channels,), jnp.float32)
        self.bt2 = jnp.zeros((out_channels,), jnp.float32)

    def _conv_branch(self, x_nhwc, w, b, kh, kw, stride, padding, tm, nrows_pad, cp):
        patches, ho, wo = _im2col(x_nhwc, kh, kw, stride, padding)
        nrows, k = patches.shape
        kp = _round_up(k, _LANE)
        p = _pad2d(patches, nrows_pad, kp).astype(jnp.bfloat16)
        ws = _pad2d(_w_to_gemm(w), kp, cp).astype(jnp.bfloat16)
        bp = _pad1d(b, cp)
        y, stats = _conv_gemm(p, ws, bp.reshape(1, cp), tm=tm)
        return y, stats, bp, ho, wo, nrows

    def __call__(self, x_nchw):
        x = jnp.transpose(x_nchw, (0, 2, 3, 1)).astype(jnp.float32)    # NCHW -> NHWC
        n, h, w, cin = x.shape
        cout = self.cout
        cp = _round_up(cout, _LANE)

        ho = (h + 2 - 3) // self.stride + 1
        wo = (w + 2 - 3) // self.stride + 1
        nrows = n * ho * wo
        tm = min(_round_up(_ROW_TILE_TARGET, _SUBLANE), _round_up(nrows, _SUBLANE))
        nrows_pad = _round_up(nrows, tm)
        n_pad = nrows_pad - nrows

        # ---- conv1 (3x3, pad 1, stride s) -> bn1 (two-pass) -> relu ----------------
        y1_raw, st1, b1p, ho1, wo1, _ = self._conv_branch(
            x, self.w1, self.b1, 3, 3, self.stride, 1, tm, nrows_pad, cp)
        sc1, sh1 = _bn_scale_shift(st1, b1p, _pad1d(self.g1, cp), _pad1d(self.bt1, cp),
                                   nrows, n_pad)
        y1 = _bn_apply(y1_raw, sc1, sh1, None, do_relu=True, tm=tm)
        y1_nhwc = y1[:nrows, :cout].reshape(n, ho1, wo1, cout)

        # ---- residual branch --------------------------------------------------------
        if self.use_1x1conv:
            res, _, _, _, _, _ = self._conv_branch(
                x, self.w3, self.b3, 1, 1, self.stride, 0, tm, nrows_pad, cp)
        else:
            assert self.cin == self.cout and self.stride == 1, (
                "identity residual requires Cin == Cout and stride == 1")
            res = _pad2d(x.reshape(n * h * w, cin), nrows_pad, cp)

        # ---- conv2 (3x3, pad 1) -> bn2 -> + residual -> relu -------------------------
        y2_raw, st2, b2p, ho2, wo2, _ = self._conv_branch(
            y1_nhwc, self.w2, self.b2, 3, 3, 1, 1, tm, nrows_pad, cp)
        sc2, sh2 = _bn_scale_shift(st2, b2p, _pad1d(self.g2, cp), _pad1d(self.bt2, cp),
                                   nrows, n_pad)
        out = _bn_apply(y2_raw, sc2, sh2, res, do_relu=True, tm=tm)

        out = out[:nrows, :cout].reshape(n, ho2, wo2, cout)
        return jnp.transpose(out, (0, 3, 1, 2))                        # -> NCHW


# ---------------------------------------------------------------------------
# Pure-JAX reference (correctness check only)
# ---------------------------------------------------------------------------
def _ref_forward(m: ResNetModelPallas, x_nchw):
    def conv(x, w, b, s, p):
        y = lax.conv_general_dilated(x, w, (s, s), [(p, p), (p, p)],
                                     dimension_numbers=("NCHW", "OIHW", "NCHW"))
        return y + b[None, :, None, None]

    def bn(y, g, bt):
        mean = y.mean(axis=(0, 2, 3), keepdims=True)
        var = ((y - mean) ** 2).mean(axis=(0, 2, 3), keepdims=True)
        return (y - mean) * lax.rsqrt(var + _BN_EPS) * g[None, :, None, None] \
            + bt[None, :, None, None]

    y = jnp.maximum(bn(conv(x_nchw, m.w1, m.b1, m.stride, 1), m.g1, m.bt1), 0.0)
    y = bn(conv(y, m.w2, m.b2, 1, 1), m.g2, m.bt2)
    r = conv(x_nchw, m.w3, m.b3, m.stride, 0) if m.use_1x1conv else x_nchw
    return jnp.maximum(y + r, 0.0)


if __name__ == "__main__":
    N, CIN, COUT, H, W = 2, 8, 16, 16, 16
    root = jax.random.PRNGKey(0)
    k_model, k_x = jax.random.split(root)

    model = ResNetModelPallas(CIN, COUT, use_1x1conv=True, stride=2, key=k_model)
    x = jax.random.normal(k_x, (N, CIN, H, W), jnp.float32)

    fwd = jax.jit(lambda inp: model(inp))
    out = jax.block_until_ready(fwd(x))

    ref = jax.block_until_ready(_ref_forward(model, x))
    assert out.shape == ref.shape == (N, COUT, H // 2, W // 2)
    np.testing.assert_allclose(np.asarray(out), np.asarray(ref), rtol=5e-2, atol=5e-2)

    print("KERNEL_OK")
</pallas_src>

<mosaic_0001>
module attributes {stable_mosaic.version = 11 : i64} {
  func.func @_conv_gemm_kernel(%arg0: i32, %arg1: memref<128x128xbf16, #tpu.memory_space<vmem>>, %arg2: memref<128x128xbf16, #tpu.memory_space<vmem>>, %arg3: memref<1x128xf32, #tpu.memory_space<vmem>>, %arg4: memref<128x128xf32, #tpu.memory_space<vmem>>, %arg5: memref<1x8x128xf32, #tpu.memory_space<vmem>>) attributes {dimension_semantics = [#tpu.dimension_semantics<parallel>], iteration_bounds = array<i64: 1>, scalar_prefetch = 0 : i64, scratch_operands = 0 : i64, tpu.core_type = #tpu.core_type<tc>, window_params = [{transform_indices = @transform_0, window_bounds = array<i64: 128, 128>}, {pipeline_mode = #tpu.pipeline_mode<synchronous>, transform_indices = @transform_1, window_bounds = array<i64: 128, 128>}, {pipeline_mode = #tpu.pipeline_mode<synchronous>, transform_indices = @transform_2, window_bounds = array<i64: 1, 128>}, {transform_indices = @transform_3, window_bounds = array<i64: 128, 128>}, {transform_indices = @transform_4, window_bounds = array<i64: 1, 8, 128>}]} {
    %c0 = arith.constant 0 : index
    %c0_0 = arith.constant 0 : index
    %0 = vector.load %arg1[%c0, %c0_0] : memref<128x128xbf16, #tpu.memory_space<vmem>>, vector<128x128xbf16>
    %c0_1 = arith.constant 0 : index
    %c0_2 = arith.constant 0 : index
    %1 = vector.load %arg2[%c0_1, %c0_2] : memref<128x128xbf16, #tpu.memory_space<vmem>>, vector<128x128xbf16>
    %cst = arith.constant dense<0.000000e+00> : vector<128x128xf32>
    %2 = tpu.matmul %0, %1, %cst {dimension_numbers = #tpu.dot_dimension_numbers<[1], [0], [0], [1], [0, 0, 1, 1], [], []>} : vector<128x128xbf16>, vector<128x128xbf16>, vector<128x128xf32> -> vector<128x128xf32>
    %c0_3 = arith.constant 0 : index
    %c0_4 = arith.constant 0 : index
    %3 = vector.load %arg3[%c0_3, %c0_4] : memref<1x128xf32, #tpu.memory_space<vmem>>, vector<1x128xf32>
    %4 = vector.broadcast %3 : vector<1x128xf32> to vector<128x128xf32>
    %5 = arith.addf %2, %4 : vector<128x128xf32>
    %c0_5 = arith.constant 0 : index
    %c0_6 = arith.constant 0 : index
    %6 = vector.load %arg4[%c0_5, %c0_6] : memref<128x128xf32, #tpu.memory_space<vmem>>, vector<128x128xf32>
    tpu.vector_store %arg4[%c0_5, %c0_6], %5 {strides = array<i32>} : memref<128x128xf32, #tpu.memory_space<vmem>>, vector<128x128xf32>,
    %cst_7 = arith.constant dense<0.000000e+00> : vector<128xf32>
    %7 = vector.multi_reduction <add>, %5, %cst_7 [0] : vector<128x128xf32> to vector<128xf32>
    %8 = vector.shape_cast %7 : vector<128xf32> to vector<1x128xf32>
    %9 = arith.mulf %5, %5 : vector<128x128xf32>
    %cst_8 = arith.constant dense<0.000000e+00> : vector<128xf32>
    %10 = vector.multi_reduction <add>, %9, %cst_8 [0] : vector<128x128xf32> to vector<128xf32>
    %11 = vector.shape_cast %10 : vector<128xf32> to vector<1x128xf32>
    %cst_9 = arith.constant 0.000000e+00 : f32
    %12 = vector.broadcast %cst_9 : f32 to vector<6x128xf32>
    %13 = tpu.concatenate %8, %11, %12 in 0 : vector<1x128xf32>, vector<1x128xf32>, vector<6x128xf32> -> vector<8x128xf32>
    %14 = vector.shape_cast %13 : vector<8x128xf32> to vector<1x8x128xf32>
    %c0_10 = arith.constant 0 : index
    %c0_11 = arith.constant 0 : index
    %c0_12 = arith.constant 0 : index
    %15 = vector.load %arg5[%c0_10, %c0_11, %c0_12] : memref<1x8x128xf32, #tpu.memory_space<vmem>>, vector<1x8x128xf32>
    tpu.vector_store %arg5[%c0_10, %c0_11, %c0_12], %14 {strides = array<i32>} : memref<1x8x128xf32, #tpu.memory_space<vmem>>, vector<1x8x128xf32>,
    return
  }
  func.func @transform_0(%arg0: i32) -> (i32, i32) {
    %c0_i32 = arith.constant 0 : i32
    %c0_i32_0 = arith.constant 0 : i32
    return %arg0, %c0_i32 : i32, i32
  }
  func.func @transform_1(%arg0: i32) -> (i32, i32) {
    %c0_i32 = arith.constant 0 : i32
    %c0_i32_0 = arith.constant 0 : i32
    %c0_i32_1 = arith.constant 0 : i32
    return %c0_i32, %c0_i32_0 : i32, i32
  }
  func.func @transform_2(%arg0: i32) -> (i32, i32) {
    %c0_i32 = arith.constant 0 : i32
    %c0_i32_0 = arith.constant 0 : i32
    %c0_i32_1 = arith.constant 0 : i32
    return %c0_i32, %c0_i32_0 : i32, i32
  }
  func.func @transform_3(%arg0: i32) -> (i32, i32) {
    %c0_i32 = arith.constant 0 : i32
    %c0_i32_0 = arith.constant 0 : i32
    return %arg0, %c0_i32 : i32, i32
  }
  func.func @transform_4(%arg0: i32) -> (i32, i32, i32) {
    %c0_i32 = arith.constant 0 : i32
    %c0_i32_0 = arith.constant 0 : i32
    %c0_i32_1 = arith.constant 0 : i32
    return %arg0, %c0_i32, %c0_i32_0 : i32, i32, i32
  }
}

module attributes {stable_mosaic.version = 11 : i64} {
  func.func @kernel(%arg0: i32, %arg1: memref<128x128xf32, #tpu.memory_space<vmem>>, %arg2: memref<1x128xf32, #tpu.memory_space<vmem>>, %arg3: memref<1x128xf32, #tpu.memory_space<vmem>>, %arg4: memref<128x128xf32, #tpu.memory_space<vmem>>) attributes {dimension_semantics = [#tpu.dimension_semantics<parallel>], iteration_bounds = array<i64: 1>, scalar_prefetch = 0 : i64, scratch_operands = 0 : i64, tpu.core_type = #tpu.core_type<tc>, window_params = [{transform_indices = @transform_0, window_bounds = array<i64: 128, 128>}, {pipeline_mode = #tpu.pipeline_mode<synchronous>, transform_indices = @transform_1, window_bounds = array<i64: 1, 128>}, {pipeline_mode = #tpu.pipeline_mode<synchronous>, transform_indices = @transform_2, window_bounds = array<i64: 1, 128>}, {transform_indices = @transform_3, window_bounds = array<i64: 128, 128>}]} {
    %c0 = arith.constant 0 : index
    %c0_0 = arith.constant 0 : index
    %0 = vector.load %arg1[%c0, %c0_0] : memref<128x128xf32, #tpu.memory_space<vmem>>, vector<128x128xf32>
    %c0_1 = arith.constant 0 : index
    %c0_2 = arith.constant 0 : index
    %1 = vector.load %arg2[%c0_1, %c0_2] : memref<1x128xf32, #tpu.memory_space<vmem>>, vector<1x128xf32>
    %2 = vector.broadcast %1 : vector<1x128xf32> to vector<128x128xf32>
    %3 = arith.mulf %0, %2 : vector<128x128xf32>
    %c0_3 = arith.constant 0 : index
    %c0_4 = arith.constant 0 : index
    %4 = vector.load %arg3[%c0_3, %c0_4] : memref<1x128xf32, #tpu.memory_space<vmem>>, vector<1x128xf32>
    %5 = vector.broadcast %4 : vector<1x128xf32> to vector<128x128xf32>
    %6 = arith.addf %3, %5 : vector<128x128xf32>
    %cst = arith.constant 0.000000e+00 : f32
    %7 = vector.broadcast %cst : f32 to vector<128x128xf32>
    %8 = arith.maximumf %6, %7 : vector<128x128xf32>
    %c0_5 = arith.constant 0 : index
    %c0_6 = arith.constant 0 : index
    %9 = vector.load %arg4[%c0_5, %c0_6] : memref<128x128xf32, #tpu.memory_space<vmem>>, vector<128x128xf32>
    tpu.vector_store %arg4[%c0_5, %c0_6], %8 {strides = array<i32>} : memref<128x128xf32, #tpu.memory_space<vmem>>, vector<128x128xf32>,
    return
  }
  func.func @transform_0(%arg0: i32) -> (i32, i32) {
    %c0_i32 = arith.constant 0 : i32
    %c0_i32_0 = arith.constant 0 : i32
    return %arg0, %c0_i32 : i32, i32
  }
  func.func @transform_1(%arg0: i32) -> (i32, i32) {
    %c0_i32 = arith.constant 0 : i32
    %c0_i32_0 = arith.constant 0 : i32
    %c0_i32_1 = arith.constant 0 : i32
    return %c0_i32, %c0_i32_0 : i32, i32
  }
  func.func @transform_2(%arg0: i32) -> (i32, i32) {
    %c0_i32 = arith.constant 0 : i32
    %c0_i32_0 = arith.constant 0 : i32
    %c0_i32_1 = arith.constant 0 : i32
    return %c0_i32, %c0_i32_0 : i32, i32
  }
  func.func @transform_3(%arg0: i32) -> (i32, i32) {
    %c0_i32 = arith.constant 0 : i32
    %c0_i32_0 = arith.constant 0 : i32
    return %arg0, %c0_i32 : i32, i32
  }
}

module attributes {stable_mosaic.version = 11 : i64} {
  func.func @_conv_gemm_kernel(%arg0: i32, %arg1: memref<128x128xbf16, #tpu.memory_space<vmem>>, %arg2: memref<128x128xbf16, #tpu.memory_space<vmem>>, %arg3: memref<1x128xf32, #tpu.memory_space<vmem>>, %arg4: memref<128x128xf32, #tpu.memory_space<vmem>>, %arg5: memref<1x8x128xf32, #tpu.memory_space<vmem>>) attributes {dimension_semantics = [#tpu.dimension_semantics<parallel>], iteration_bounds = array<i64: 1>, scalar_prefetch = 0 : i64, scratch_operands = 0 : i64, tpu.core_type = #tpu.core_type<tc>, window_params = [{transform_indices = @transform_0, window_bounds = array<i64: 128, 128>}, {pipeline_mode = #tpu.pipeline_mode<synchronous>, transform_indices = @transform_1, window_bounds = array<i64: 128, 128>}, {pipeline_mode = #tpu.pipeline_mode<synchronous>, transform_indices = @transform_2, window_bounds = array<i64: 1, 128>}, {transform_indices = @transform_3, window_bounds = array<i64: 128, 128>}, {transform_indices = @transform_4, window_bounds = array<i64: 1, 8, 128>}]} {
    %c0 = arith.constant 0 : index
    %c0_0 = arith.constant 0 : index
    %0 = vector.load %arg1[%c0, %c0_0] : memref<128x128xbf16, #tpu.memory_space<vmem>>, vector<128x128xbf16>
    %c0_1 = arith.constant 0 : index
    %c0_2 = arith.constant 0 : index
    %1 = vector.load %arg2[%c0_1, %c0_2] : memref<128x128xbf16, #tpu.memory_space<vmem>>, vector<128x128xbf16>
    %cst = arith.constant dense<0.000000e+00> : vector<128x128xf32>
    %2 = tpu.matmul %0, %1, %cst {dimension_numbers = #tpu.dot_dimension_numbers<[1], [0], [0], [1], [0, 0, 1, 1], [], []>} : vector<128x128xbf16>, vector<128x128xbf16>, vector<128x128xf32> -> vector<128x128xf32>
    %c0_3 = arith.constant 0 : index
    %c0_4 = arith.constant 0 : index
    %3 = vector.load %arg3[%c0_3, %c0_4] : memref<1x128xf32, #tpu.memory_space<vmem>>, vector<1x128xf32>
    %4 = vector.broadcast %3 : vector<1x128xf32> to vector<128x128xf32>
    %5 = arith.addf %2, %4 : vector<128x128xf32>
    %c0_5 = arith.constant 0 : index
    %c0_6 = arith.constant 0 : index
    %6 = vector.load %arg4[%c0_5, %c0_6] : memref<128x128xf32, #tpu.memory_space<vmem>>, vector<128x128xf32>
    tpu.vector_store %arg4[%c0_5, %c0_6], %5 {strides = array<i32>} : memref<128x128xf32, #tpu.memory_space<vmem>>, vector<128x128xf32>,
    %cst_7 = arith.constant dense<0.000000e+00> : vector<128xf32>
    %7 = vector.multi_reduction <add>, %5, %cst_7 [0] : vector<128x128xf32> to vector<128xf32>
    %8 = vector.shape_cast %7 : vector<128xf32> to vector<1x128xf32>
    %9 = arith.mulf %5, %5 : vector<128x128xf32>
    %cst_8 = arith.constant dense<0.000000e+00> : vector<128xf32>
    %10 = vector.multi_reduction <add>, %9, %cst_8 [0] : vector<128x128xf32> to vector<128xf32>
    %11 = vector.shape_cast %10 : vector<128xf32> to vector<1x128xf32>
    %cst_9 = arith.constant 0.000000e+00 : f32
    %12 = vector.broadcast %cst_9 : f32 to vector<6x128xf32>
    %13 = tpu.concatenate %8, %11, %12 in 0 : vector<1x128xf32>, vector<1x128xf32>, vector<6x128xf32> -> vector<8x128xf32>
    %14 = vector.shape_cast %13 : vector<8x128xf32> to vector<1x8x128xf32>
    %c0_10 = arith.constant 0 : index
    %c0_11 = arith.constant 0 : index
    %c0_12 = arith.constant 0 : index
    %15 = vector.load %arg5[%c0_10, %c0_11, %c0_12] : memref<1x8x128xf32, #tpu.memory_space<vmem>>, vector<1x8x128xf32>
    tpu.vector_store %arg5[%c0_10, %c0_11, %c0_12], %14 {strides = array<i32>} : memref<1x8x128xf32, #tpu.memory_space<vmem>>, vector<1x8x128xf32>,
    return
  }
  func.func @transform_0(%arg0: i32) -> (i32, i32) {
    %c0_i32 = arith.constant 0 : i32
    %c0_i32_0 = arith.constant 0 : i32
    return %arg0, %c0_i32 : i32, i32
  }
  func.func @transform_1(%arg0: i32) -> (i32, i32) {
    %c0_i32 = arith.constant 0 : i32
    %c0_i32_0 = arith.constant 0 : i32
    %c0_i32_1 = arith.constant 0 : i32
    return %c0_i32, %c0_i32_0 : i32, i32
  }
  func.func @transform_2(%arg0: i32) -> (i32, i32) {
    %c0_i32 = arith.constant 0 : i32
    %c0_i32_0 = arith.constant 0 : i32
    %c0_i32_1 = arith.constant 0 : i32
    return %c0_i32, %c0_i32_0 : i32, i32
  }
  func.func @transform_3(%arg0: i32) -> (i32, i32) {
    %c0_i32 = arith.constant 0 : i32
    %c0_i32_0 = arith.constant 0 : i32
    return %arg0, %c0_i32 : i32, i32
  }
  func.func @transform_4(%arg0: i32) -> (i32, i32, i32) {
    %c0_i32 = arith.constant 0 : i32
    %c0_i32_0 = arith.constant 0 : i32
    %c0_i32_1 = arith.constant 0 : i32
    return %arg0, %c0_i32, %c0_i32_0 : i32, i32, i32
  }
}

module attributes {stable_mosaic.version = 11 : i64} {
  func.func @kernel(%arg0: i32, %arg1: memref<128x128xf32, #tpu.memory_space<vmem>>, %arg2: memref<1x128xf32, #tpu.memory_space<vmem>>, %arg3: memref<1x128xf32, #tpu.memory_space<vmem>>, %arg4: memref<128x128xf32, #tpu.memory_space<vmem>>, %arg5: memref<128x128xf32, #tpu.memory_space<vmem>>) attributes {dimension_semantics = [#tpu.dimension_semantics<parallel>], iteration_bounds = array<i64: 1>, scalar_prefetch = 0 : i64, scratch_operands = 0 : i64, tpu.core_type = #tpu.core_type<tc>, window_params = [{transform_indices = @transform_0, window_bounds = array<i64: 128, 128>}, {pipeline_mode = #tpu.pipeline_mode<synchronous>, transform_indices = @transform_1, window_bounds = array<i64: 1, 128>}, {pipeline_mode = #tpu.pipeline_mode<synchronous>, transform_indices = @transform_2, window_bounds = array<i64: 1, 128>}, {transform_indices = @transform_3, window_bounds = array<i64: 128, 128>}, {transform_indices = @transform_4, window_bounds = array<i64: 128, 128>}]} {
    %c0 = arith.constant 0 : index
    %c0_0 = arith.constant 0 : index
    %0 = vector.load %arg1[%c0, %c0_0] : memref<128x128xf32, #tpu.memory_space<vmem>>, vector<128x128xf32>
    %c0_1 = arith.constant 0 : index
    %c0_2 = arith.constant 0 : index
    %1 = vector.load %arg2[%c0_1, %c0_2] : memref<1x128xf32, #tpu.memory_space<vmem>>, vector<1x128xf32>
    %2 = vector.broadcast %1 : vector<1x128xf32> to vector<128x128xf32>
    %3 = arith.mulf %0, %2 : vector<128x128xf32>
    %c0_3 = arith.constant 0 : index
    %c0_4 = arith.constant 0 : index
    %4 = vector.load %arg3[%c0_3, %c0_4] : memref<1x128xf32, #tpu.memory_space<vmem>>, vector<1x128xf32>
    %5 = vector.broadcast %4 : vector<1x128xf32> to vector<128x128xf32>
    %6 = arith.addf %3, %5 : vector<128x128xf32>
    %c0_5 = arith.constant 0 : index
    %c0_6 = arith.constant 0 : index
    %7 = vector.load %arg4[%c0_5, %c0_6] : memref<128x128xf32, #tpu.memory_space<vmem>>, vector<128x128xf32>
    %8 = arith.addf %6, %7 : vector<128x128xf32>
    %cst = arith.constant 0.000000e+00 : f32
    %9 = vector.broadcast %cst : f32 to vector<128x128xf32>
    %10 = arith.maximumf %8, %9 : vector<128x128xf32>
    %c0_7 = arith.constant 0 : index
    %c0_8 = arith.constant 0 : index
    %11 = vector.load %arg5[%c0_7, %c0_8] : memref<128x128xf32, #tpu.memory_space<vmem>>, vector<128x128xf32>
    tpu.vector_store %arg5[%c0_7, %c0_8], %10 {strides = array<i32>} : memref<128x128xf32, #tpu.memory_space<vmem>>, vector<128x128xf32>,
    return
  }
  func.func @transform_0(%arg0: i32) -> (i32, i32) {
    %c0_i32 = arith.constant 0 : i32
    %c0_i32_0 = arith.constant 0 : i32
    return %arg0, %c0_i32 : i32, i32
  }
  func.func @transform_1(%arg0: i32) -> (i32, i32) {
    %c0_i32 = arith.constant 0 : i32
    %c0_i32_0 = arith.constant 0 : i32
    %c0_i32_1 = arith.constant 0 : i32
    return %c0_i32, %c0_i32_0 : i32, i32
  }
  func.func @transform_2(%arg0: i32) -> (i32, i32) {
    %c0_i32 = arith.constant 0 : i32
    %c0_i32_0 = arith.constant 0 : i32
    %c0_i32_1 = arith.constant 0 : i32
    return %c0_i32, %c0_i32_0 : i32, i32
  }
  func.func @transform_3(%arg0: i32) -> (i32, i32) {
    %c0_i32 = arith.constant 0 : i32
    %c0_i32_0 = arith.constant 0 : i32
    return %arg0, %c0_i32 : i32, i32
  }
  func.func @transform_4(%arg0: i32) -> (i32, i32) {
    %c0_i32 = arith.constant 0 : i32
    %c0_i32_0 = arith.constant 0 : i32
    return %arg0, %c0_i32 : i32, i32
  }
}

module attributes {stable_mosaic.version = 11 : i64} {
  func.func @_conv_gemm_kernel(%arg0: i32, %arg1: memref<128x256xbf16, #tpu.memory_space<vmem>>, %arg2: memref<256x128xbf16, #tpu.memory_space<vmem>>, %arg3: memref<1x128xf32, #tpu.memory_space<vmem>>, %arg4: memref<128x128xf32, #tpu.memory_space<vmem>>, %arg5: memref<1x8x128xf32, #tpu.memory_space<vmem>>) attributes {dimension_semantics = [#tpu.dimension_semantics<parallel>], iteration_bounds = array<i64: 1>, scalar_prefetch = 0 : i64, scratch_operands = 0 : i64, tpu.core_type = #tpu.core_type<tc>, window_params = [{transform_indices = @transform_0, window_bounds = array<i64: 128, 256>}, {pipeline_mode = #tpu.pipeline_mode<synchronous>, transform_indices = @transform_1, window_bounds = array<i64: 256, 128>}, {pipeline_mode = #tpu.pipeline_mode<synchronous>, transform_indices = @transform_2, window_bounds = array<i64: 1, 128>}, {transform_indices = @transform_3, window_bounds = array<i64: 128, 128>}, {transform_indices = @transform_4, window_bounds = array<i64: 1, 8, 128>}]} {
    %c0 = arith.constant 0 : index
    %c0_0 = arith.constant 0 : index
    %0 = vector.load %arg1[%c0, %c0_0] : memref<128x256xbf16, #tpu.memory_space<vmem>>, vector<128x256xbf16>
    %c0_1 = arith.constant 0 : index
    %c0_2 = arith.constant 0 : index
    %1 = vector.load %arg2[%c0_1, %c0_2] : memref<256x128xbf16, #tpu.memory_space<vmem>>, vector<256x128xbf16>
    %cst = arith.constant dense<0.000000e+00> : vector<128x128xf32>
    %2 = tpu.matmul %0, %1, %cst {dimension_numbers = #tpu.dot_dimension_numbers<[1], [0], [0], [1], [0, 0, 1, 1], [], []>} : vector<128x256xbf16>, vector<256x128xbf16>, vector<128x128xf32> -> vector<128x128xf32>
    %c0_3 = arith.constant 0 : index
    %c0_4 = arith.constant 0 : index
    %3 = vector.load %arg3[%c0_3, %c0_4] : memref<1x128xf32, #tpu.memory_space<vmem>>, vector<1x128xf32>
    %4 = vector.broadcast %3 : vector<1x128xf32> to vector<128x128xf32>
    %5 = arith.addf %2, %4 : vector<128x128xf32>
    %c0_5 = arith.constant 0 : index
    %c0_6 = arith.constant 0 : index
    %6 = vector.load %arg4[%c0_5, %c0_6] : memref<128x128xf32, #tpu.memory_space<vmem>>, vector<128x128xf32>
    tpu.vector_store %arg4[%c0_5, %c0_6], %5 {strides = array<i32>} : memref<128x128xf32, #tpu.memory_space<vmem>>, vector<128x128xf32>,
    %cst_7 = arith.constant dense<0.000000e+00> : vector<128xf32>
    %7 = vector.multi_reduction <add>, %5, %cst_7 [0] : vector<128x128xf32> to vector<128xf32>
    %8 = vector.shape_cast %7 : vector<128xf32> to vector<1x128xf32>
    %9 = arith.mulf %5, %5 : vector<128x128xf32>
    %cst_8 = arith.constant dense<0.000000e+00> : vector<128xf32>
    %10 = vector.multi_reduction <add>, %9, %cst_8 [0] : vector<128x128xf32> to vector<128xf32>
    %11 = vector.shape_cast %10 : vector<128xf32> to vector<1x128xf32>
    %cst_9 = arith.constant 0.000000e+00 : f32
    %12 = vector.broadcast %cst_9 : f32 to vector<6x128xf32>
    %13 = tpu.concatenate %8, %11, %12 in 0 : vector<1x128xf32>, vector<1x128xf32>, vector<6x128xf32> -> vector<8x128xf32>
    %14 = vector.shape_cast %13 : vector<8x128xf32> to vector<1x8x128xf32>
    %c0_10 = arith.constant 0 : index
    %c0_11 = arith.constant 0 : index
    %c0_12 = arith.constant 0 : index
    %15 = vector.load %arg5[%c0_10, %c0_11, %c0_12] : memref<1x8x128xf32, #tpu.memory_space<vmem>>, vector<1x8x128xf32>
    tpu.vector_store %arg5[%c0_10, %c0_11, %c0_12], %14 {strides = array<i32>} : memref<1x8x128xf32, #tpu.memory_space<vmem>>, vector<1x8x128xf32>,
    return
  }
  func.func @transform_0(%arg0: i32) -> (i32, i32) {
    %c0_i32 = arith.constant 0 : i32
    %c0_i32_0 = arith.constant 0 : i32
    return %arg0, %c0_i32 : i32, i32
  }
  func.func @transform_1(%arg0: i32) -> (i32, i32) {
    %c0_i32 = arith.constant 0 : i32
    %c0_i32_0 = arith.constant 0 : i32
    %c0_i32_1 = arith.constant 0 : i32
    return %c0_i32, %c0_i32_0 : i32, i32
  }
  func.func @transform_2(%arg0: i32) -> (i32, i32) {
    %c0_i32 = arith.constant 0 : i32
    %c0_i32_0 = arith.constant 0 : i32
    %c0_i32_1 = arith.constant 0 : i32
    return %c0_i32, %c0_i32_0 : i32, i32
  }
  func.func @transform_3(%arg0: i32) -> (i32, i32) {
    %c0_i32 = arith.constant 0 : i32
    %c0_i32_0 = arith.constant 0 : i32
    return %arg0, %c0_i32 : i32, i32
  }
  func.func @transform_4(%arg0: i32) -> (i32, i32, i32) {
    %c0_i32 = arith.constant 0 : i32
    %c0_i32_0 = arith.constant 0 : i32
    %c0_i32_1 = arith.constant 0 : i32
    return %arg0, %c0_i32, %c0_i32_0 : i32, i32, i32
  }
}

</mosaic_0001>

<llo_original>
// kernel: _lambda_.7
$region0: #{_lambda_.7}
  #allocation0 [shape = 'u32[]', space=smem, size = 0x4, offset = 0x4, fixed_abs, tag = 'smem constant byte address 0x4 - core index']
  #allocation1 [shape = 'u32[144,128]{1,0:T(1,128)}', space=vmem, size = 0x12000, scoped, tag = 'internal scratch']
  %s0 = inlined_call_operand.vmem [shape: bf16[128,128], index: 0, kind: input, shape index: {}]
  %s1 = inlined_call_operand.vmem [shape: bf16[128,128], index: 1, kind: input, shape index: {}]
  %s2 = inlined_call_operand.vmem [shape: f32[1,128], index: 2, kind: input, shape index: {}]
  %s3 = inlined_call_operand.vmem [shape: f32[128,128], index: 3, kind: output, shape index: {0}]
  %s4 = inlined_call_operand.hbm [shape: f32[1,8,128], index: 4, kind: output, shape index: {1}]
  %5 = xla_tuple %s3, %s4
  %s6 = sld [smem:[#allocation0]]
  $region30: #{_lambda_.7} parent=0
    _
  %s8 = ssub.s32 1, %s6
  %s9 = scalar_select 0, %s8, %s6
  $region1: #{_lambda_.7} parent=0
    #allocation2 [shape = 'u8[4096]{0}', space=vmem, size = 0x1000, scoped, tag = 'output window, operand 1, single buffered']
    #allocation3 [shape = 's32[1]{0}', space=sflag, size = 0x4, scoped, tag = 'scoped memory for _lambda_.7']
    %10 = vsyncpa [#allocation3], 0
    // Predicated region
    $region2: #{_lambda_.7} parent=1 // pred_check
      _
    $region3: #{_lambda_.7} parent=1 // pred_check_branch
      %12 = sbr.rel (0) target = $region5
    $region4: #{_lambda_.7} parent=1 // pred_region
      _
    $region5: #{_lambda_.7} parent=1 // pred_fallthru
      _
    // Predicated region
    $region6: #{_lambda_.7} parent=1 // pred_check
      _
    $region7: #{_lambda_.7} parent=1 // pred_check_branch
      %14 = sbr.rel (0) target = $region9
    $region8: #{_lambda_.7} parent=1 // pred_region
      _
    $region9: #{_lambda_.7} parent=1 // pred_fallthru
      _
    // Predicated region
    $region10: #{_lambda_.7} parent=1 // pred_check
      _
    $region11: #{_lambda_.7} parent=1 // pred_check_branch
      %16 = sbr.rel (0) target = $region13
    $region12: #{_lambda_.7} parent=1 // pred_region
      _
    $region13: #{_lambda_.7} parent=1 // pred_fallthru
      _
    %v18 = vld [vmem:[%s0] sm:$0xf]
    %v19 = vld [vmem:[%s0 + $0x4] sm:$0xf]
    %v20 = vld [vmem:[%s0 + $0x8] sm:$0xf]
    %v21 = vld [vmem:[%s0 + $0xc] sm:$0xf]
    %v22 = vld [vmem:[%s0 + $0x10] sm:$0xf]
    %v23 = vld [vmem:[%s0 + $0x14] sm:$0xf]
    %v24 = vld [vmem:[%s0 + $0x18] sm:$0xf]
    %v25 = vld [vmem:[%s0 + $0x1c] sm:$0xf]
    %v26 = vld [vmem:[%s0 + $0x20] sm:$0xf]
    %v27 = vld [vmem:[%s0 + $0x24] sm:$0xf]
    %v28 = vld [vmem:[%s0 + $0x28] sm:$0xf]
    %v29 = vld [vmem:[%s0 + $0x2c] sm:$0xf]
    %v30 = vld [vmem:[%s0 + $0x30] sm:$0xf]
    %v31 = vld [vmem:[%s0 + $0x34] sm:$0xf]
    %v32 = vld [vmem:[%s0 + $0x38] sm:$0xf]
    %v33 = vld [vmem:[%s0 + $0x3c] sm:$0xf]
    %v34 = vld [vmem:[%s1] sm:$0xf]
    %v35 = vld [vmem:[%s1 + $0x4] sm:$0xf]
    %v36 = vld [vmem:[%s1 + $0x8] sm:$0xf]
    %v37 = vld [vmem:[%s1 + $0xc] sm:$0xf]
    %v38 = vld [vmem:[%s1 + $0x10] sm:$0xf]
    %v39 = vld [vmem:[%s1 + $0x14] sm:$0xf]
    %v40 = vld [vmem:[%s1 + $0x18] sm:$0xf]
    %v41 = vld [vmem:[%s1 + $0x1c] sm:$0xf]
    %v42 = vld [vmem:[%s1 + $0x20] sm:$0xf]
    %v43 = vld [vmem:[%s1 + $0x24] sm:$0xf]
    %v44 = vld [vmem:[%s1 + $0x28] sm:$0xf]
    %v45 = vld [vmem:[%s1 + $0x2c] sm:$0xf]
    %v46 = vld [vmem:[%s1 + $0x30] sm:$0xf]
    %v47 = vld [vmem:[%s1 + $0x34] sm:$0xf]
    %v48 = vld [vmem:[%s1 + $0x38] sm:$0xf]
    %v49 = vld [vmem:[%s1 + $0x3c] sm:$0xf]
    %v50 = vld [vmem:[%s2] sm:$0x1]
    %v52 = vlaneseq
    %v53 = vshrl.u32 %v52, 7
    %v54 = vsub.s32 0, %v53
    %v55 = vrot.slane %v50, %v54
    %v73 = vunpack.c.l.b16 %v18
    %v74 = vunpack.c.l.b16 %v19
    %v75 = vunpack.c.l.b16 %v20
    %v76 = vunpack.c.l.b16 %v21
    %v77 = vunpack.c.l.b16 %v22
    %v78 = vunpack.c.l.b16 %v23
    %v79 = vunpack.c.l.b16 %v24
    %v80 = vunpack.c.l.b16 %v25
    %v81 = vunpack.c.l.b16 %v26
    %v82 = vunpack.c.l.b16 %v27
    %v83 = vunpack.c.l.b16 %v28
    %v84 = vunpack.c.l.b16 %v29
    %v85 = vunpack.c.l.b16 %v30
    %v86 = vunpack.c.l.b16 %v31
    %v87 = vunpack.c.l.b16 %v32
    %v88 = vunpack.c.l.b16 %v33
    %v89 = vpack.c.b16 %v74, %v73
    %v90 = vpack.c.b16 %v76, %v75
    %v91 = vpack.c.b16 %v78, %v77
    %v92 = vpack.c.b16 %v80, %v79
    %v93 = vpack.c.b16 %v82, %v81
    %v94 = vpack.c.b16 %v84, %v83
    %v95 = vpack.c.b16 %v86, %v85
    %v96 = vpack.c.b16 %v88, %v87
    %v121 = vunpack.c.l.b16 %v34
    %v122 = vunpack.c.l.b16 %v35
    %v123 = vunpack.c.l.b16 %v36
    %v124 = vunpack.c.l.b16 %v37
    %v125 = vunpack.c.l.b16 %v38
    %v126 = vunpack.c.l.b16 %v39
    %v127 = vunpack.c.l.b16 %v40
    %v128 = vunpack.c.l.b16 %v41
    %v129 = vunpack.c.l.b16 %v42
    %v130 = vunpack.c.l.b16 %v43
    %v131 = vunpack.c.l.b16 %v44
    %v132 = vunpack.c.l.b16 %v45
    %v133 = vunpack.c.l.b16 %v46
    %v134 = vunpack.c.l.b16 %v47
    %v135 = vunpack.c.l.b16 %v48
    %v136 = vunpack.c.l.b16 %v49
    %v137 = vpack.c.b16 %v122, %v121
    %v138 = vpack.c.b16 %v124, %v123
    %v139 = vpack.c.b16 %v126, %v125
    %v140 = vpack.c.b16 %v128, %v127
    %v141 = vpack.c.b16 %v130, %v129
    %v142 = vpack.c.b16 %v132, %v131
    %v143 = vpack.c.b16 %v134, %v133
    %v144 = vpack.c.b16 %v136, %v135
    %153 = vmatprep.subr.bf16.mxu0 0
    %154 = vmatpush1.bf16.msra.mxu0 %v137
    %155 = vmatprep.subr.bf16.mxu0 0
    %156 = vmatpush1.bf16.msra.mxu0 %v138
    %157 = vmatprep.subr.bf16.mxu0 0
    %158 = vmatpush1.bf16.msra.mxu0 %v139
    %159 = vmatprep.subr.bf16.mxu0 0
    %160 = vmatpush1.bf16.msra.mxu0 %v140
    %161 = vmatprep.subr.bf16.mxu0 0
    %162 = vmatpush1.bf16.msra.mxu0 %v141
    %163 = vmatprep.subr.bf16.mxu0 0
    %164 = vmatpush1.bf16.msra.mxu0 %v142
    %165 = vmatprep.subr.bf16.mxu0 0
    %166 = vmatpush1.bf16.msra.mxu0 %v143
    %167 = vmatprep.subr.bf16.mxu0 0
    %168 = vmatpush1.bf16.msra.mxu0 %v144
    %169 = vmatprep.subr.bf16.mxu0 0
    %170 = vmatpush1.bf16.msra.mxu0 0
    %171 = vmatprep.subr.bf16.mxu0 0
    %172 = vmatpush1.bf16.msra.mxu0 0
    %173 = vmatprep.subr.bf16.mxu0 0
    %174 = vmatpush1.bf16.msra.mxu0 0
    %175 = vmatprep.subr.bf16.mxu0 0
    %176 = vmatpush1.bf16.msra.mxu0 0
    %177 = vmatprep.subr.bf16.mxu0 0
    %178 = vmatpush1.bf16.msra.mxu0 0
    %179 = vmatprep.subr.bf16.mxu0 0
    %180 = vmatpush1.bf16.msra.mxu0 0
    %181 = vmatprep.subr.bf16.mxu0 0
    %182 = vmatpush1.bf16.msra.mxu0 0
    %183 = vmatprep.subr.bf16.mxu0 0
    %184 = vmatpush1.bf16.msra.mxu0 0
    %185 = vmatprep.mubr.bf16.mxu0 0
    %186 = vmatmul.mubr.bf16.gmra.mrb[0].mxu0 %v89
    %v187 = vpop.f32.mrb[0].mxu0
    %v188 = vadd.f32 %v55, %v187
    %v189 = vpop.f32.mrb[0].mxu0
    %v190 = vpop.f32.mrb[0].mxu0
    %v191 = vadd.f32 %v55, %v190
    %v192 = vpop.f32.mrb[0].mxu0
    %193 = vmatprep.mubr.bf16.mxu0 0
    %194 = vmatmul.mubr.bf16.gmra.mrb[0].mxu0 %v90
    %v195 = vpop.f32.mrb[0].mxu0
    %v196 = vadd.f32 %v55, %v195
    %v197 = vpop.f32.mrb[0].mxu0
    %v198 = vpop.f32.mrb[0].mxu0
    %v199 = vadd.f32 %v55, %v198
    %v200 = vpop.f32.mrb[0].mxu0
    %201 = vmatprep.mubr.bf16.mxu0 0
    %202 = vmatmul.mubr.bf16.gmra.mrb[0].mxu0 %v91
    %v203 = vpop.f32.mrb[0].mxu0
    %v204 = vadd.f32 %v55, %v203
    %v205 = vpop.f32.mrb[0].mxu0
    %v206 = vpop.f32.mrb[0].mxu0
    %v207 = vadd.f32 %v55, %v206
    %v208 = vpop.f32.mrb[0].mxu0
    %209 = vmatprep.mubr.bf16.mxu0 0
    %210 = vmatmul.mubr.bf16.gmra.mrb[0].mxu0 %v92
    %v211 = vpop.f32.mrb[0].mxu0
    %v212 = vadd.f32 %v55, %v211
    %v213 = vpop.f32.mrb[0].mxu0
    %v214 = vpop.f32.mrb[0].mxu0
    %v215 = vadd.f32 %v55, %v214
    %v216 = vpop.f32.mrb[0].mxu0
    %217 = vmatprep.mubr.bf16.mxu0 0
    %218 = vmatmul.mubr.bf16.gmra.mrb[0].mxu0 %v93
    %v219 = vpop.f32.mrb[0].mxu0
    %v220 = vadd.f32 %v55, %v219
    %v221 = vpop.f32.mrb[0].mxu0
    %v222 = vpop.f32.mrb[0].mxu0
    %v223 = vadd.f32 %v55, %v222
    %v224 = vpop.f32.mrb[0].mxu0
    %225 = vmatprep.mubr.bf16.mxu0 0
    %226 = vmatmul.mubr.bf16.gmra.mrb[0].mxu0 %v94
    %v227 = vpop.f32.mrb[0].mxu0
    %v228 = vadd.f32 %v55, %v227
    %v229 = vpop.f32.mrb[0].mxu0
    %v230 = vpop.f32.mrb[0].mxu0
    %v231 = vadd.f32 %v55, %v230
    %v232 = vpop.f32.mrb[0].mxu0
    %233 = vmatprep.mubr.bf16.mxu0 0
    %234 = vmatmul.mubr.bf16.gmra.mrb[0].mxu0 %v95
    %v235 = vpop.f32.mrb[0].mxu0
    %v236 = vadd.f32 %v55, %v235
    %v237 = vpop.f32.mrb[0].mxu0
    %v238 = vpop.f32.mrb[0].mxu0
    %v239 = vadd.f32 %v55, %v238
    %v240 = vpop.f32.mrb[0].mxu0
    %241 = vmatprep.mubr.bf16.mxu0 0
    %242 = vmatmul.mubr.bf16.gmra.mrb[0].mxu0 %v96
    %v243 = vpop.f32.mrb[0].mxu0
    %v244 = vadd.f32 %v55, %v243
    %v245 = vpop.f32.mrb[0].mxu0
    %v246 = vpop.f32.mrb[0].mxu0
    %v247 = vadd.f32 %v55, %v246
    %v248 = vpop.f32.mrb[0].mxu0
    %249 = vdwg.mxu0
    %250 = vst [vmem:[%s3] sm:$0xff] %v188
    %251 = vst [vmem:[%s3 + $0x8] sm:$0xff] %v191
    %252 = vst [vmem:[%s3 + $0x10] sm:$0xff] %v196
    %253 = vst [vmem:[%s3 + $0x18] sm:$0xff] %v199
    %254 = vst [vmem:[%s3 + $0x20] sm:$0xff] %v204
    %255 = vst [vmem:[%s3 + $0x28] sm:$0xff] %v207
    %256 = vst [vmem:[%s3 + $0x30] sm:$0xff] %v212
    %257 = vst [vmem:[%s3 + $0x38] sm:$0xff] %v215
    %258 = vst [vmem:[%s3 + $0x40] sm:$0xff] %v220
    %259 = vst [vmem:[%s3 + $0x48] sm:$0xff] %v223
    %260 = vst [vmem:[%s3 + $0x50] sm:$0xff] %v228
    %261 = vst [vmem:[%s3 + $0x58] sm:$0xff] %v231
    %262 = vst [vmem:[%s3 + $0x60] sm:$0xff] %v236
    %263 = vst [vmem:[%s3 + $0x68] sm:$0xff] %v239
    %264 = vst [vmem:[%s3 + $0x70] sm:$0xff] %v244
    %265 = vst [vmem:[%s3 + $0x78] sm:$0xff] %v247
    %v266 = vadd.f32 %v188, %v191
    %v267 = vadd.f32 %v266, %v196
    %v268 = vadd.f32 %v267, %v199
    %v269 = vadd.f32 %v268, %v204
    %v270 = vadd.f32 %v269, %v207
    %v271 = vadd.f32 %v270, %v212
    %v272 = vadd.f32 %v271, %v215
    %v273 = vadd.f32 %v272, %v220
    %v274 = vadd.f32 %v273, %v223
    %v275 = vadd.f32 %v274, %v228
    %v276 = vadd.f32 %v275, %v231
    %v277 = vadd.f32 %v276, %v236
    %v278 = vadd.f32 %v277, %v239
    %v279 = vadd.f32 %v278, %v244
    %v280 = vadd.f32 %v279, %v247
    %v281 = vrot.slane %v280, 4
    %v282 = vadd.f32 %v280, %v281
    %v283 = vrot.slane %v282, 2
    %v284 = vadd.f32 %v282, %v283
    %v285 = vrot.slane %v284, 1
    %v286 = vadd.f32 %v284, %v285
    %v287 = vmul.f32 %v188, %v188
    %v288 = vmul.f32 %v191, %v191
    %v289 = vmul.f32 %v196, %v196
    %v290 = vmul.f32 %v199, %v199
    %v291 = vmul.f32 %v204, %v204
    %v292 = vmul.f32 %v207, %v207
    %v293 = vmul.f32 %v212, %v212
    %v294 = vmul.f32 %v215, %v215
    %v295 = vmul.f32 %v220, %v220
    %v296 = vmul.f32 %v223, %v223
    %v297 = vmul.f32 %v228, %v228
    %v298 = vmul.f32 %v231, %v231
    %v299 = vmul.f32 %v236, %v236
    %v300 = vmul.f32 %v239, %v239
    %v301 = vmul.f32 %v244, %v244
    %v302 = vmul.f32 %v247, %v247
    %v303 = vadd.f32 %v287, %v288
    %v304 = vadd.f32 %v303, %v289
    %v305 = vadd.f32 %v304, %v290
    %v306 = vadd.f32 %v305, %v291
    %v307 = vadd.f32 %v306, %v292
    %v308 = vadd.f32 %v307, %v293
    %v309 = vadd.f32 %v308, %v294
    %v310 = vadd.f32 %v309, %v295
    %v311 = vadd.f32 %v310, %v296
    %v312 = vadd.f32 %v311, %v297
    %v313 = vadd.f32 %v312, %v298
    %v314 = vadd.f32 %v313, %v299
    %v315 = vadd.f32 %v314, %v300
    %v316 = vadd.f32 %v315, %v301
    %v317 = vadd.f32 %v316, %v302
    %v318 = vrot.slane %v317, 4
    %v319 = vadd.f32 %v317, %v318
    %v320 = vrot.slane %v319, 2
    %v321 = vadd.f32 %v319, %v320
    %v322 = vrot.slane %v321, 1
    %v323 = vadd.f32 %v321, %v322
    %vm324 = vcmask 1040384
    %v325 = vsel %vm324, %v286, %v323
    %vm326 = vcmask 1041408
    %v327 = vsel %vm326, %v325, 0.0
    %328 = vst [vmem:[#allocation2] sm:$0xff] %v327
    // Predicated region
    $region14: #{_lambda_.7} parent=1 // pred_check
      _
    $region15: #{_lambda_.7} parent=1 // pred_check_branch
      %330 = sbr.rel (0) target = $region17
    $region16: #{_lambda_.7} parent=1 // pred_region
      _
    $region17: #{_lambda_.7} parent=1 // pred_fallthru
      _
    // Predicated region
    $region18: #{_lambda_.7} parent=1 // pred_check
      _
    $region19: #{_lambda_.7} parent=1 // pred_check_branch
      %332 = sbr.rel (0) target = $region21
    $region20: #{_lambda_.7} parent=1 // pred_region
      %s334 = ssub.s32 128, 128
      %335 = vsyncadd [#allocation3], %s334
      %s337 = sshll.u32 [#allocation2], 4
      %s338 = int_to_ptr.vmem [resolvable:$true] %s337
      %340 = dma.vmem_to_hbm [thread:$0]  %s338, 128, %s4, [#allocation3]
    $region21: #{_lambda_.7} parent=1 // pred_fallthru
      _
    // Predicated region
    $region22: #{_lambda_.7} parent=1 // pred_check
      _
    $region23: #{_lambda_.7} parent=1 // pred_check_branch
      %342 = sbr.rel (0) target = $region25
    $region24: #{_lambda_.7} parent=1 // pred_region
      _
    $region25: #{_lambda_.7} parent=1 // pred_fallthru
      _
    // Predicated region
    $region26: #{_lambda_.7} parent=1 // pred_check
      _
    $region27: #{_lambda_.7} parent=1 // pred_check_branch
      %344 = sbr.rel (0) target = $region29
    $region28: #{_lambda_.7} parent=1 // pred_region
      %345 = dma.done [#allocation3], 128
    $region29: #{_lambda_.7} parent=1 // pred_fallthru
      _
    %346 = vsyncpa [#allocation3], 1

// kernel: _lambda_.6
$region0: #{_lambda_.6}
  #allocation0 [shape = 'u32[]', space=smem, size = 0x4, offset = 0x4, fixed_abs, tag = 'smem constant byte address 0x4 - core index']
  #allocation1 [shape = 'u32[144,128]{1,0:T(1,128)}', space=vmem, size = 0x12000, scoped, tag = 'internal scratch']
  %s0 = inlined_call_operand.vmem [shape: f32[128,128], index: 0, kind: input, shape index: {}]
  %s1 = inlined_call_operand.vmem [shape: f32[1,128], index: 1, kind: input, shape index: {}]
  %s2 = inlined_call_operand.vmem [shape: f32[1,128], index: 2, kind: input, shape index: {}]
  %s3 = inlined_call_operand.vmem [shape: f32[128,128], index: 3, kind: output, shape index: {}]
  %s4 = sld [smem:[#allocation0]]
  $region22: #{_lambda_.6} parent=0
    _
  %s6 = ssub.s32 1, %s4
  %s7 = scalar_select 0, %s6, %s4
  // Predicated region
  $region2: #{_lambda_.6} parent=0 // pred_check
    _
  $region3: #{_lambda_.6} parent=0 // pred_check_branch
    %9 = sbr.rel (0) target = $region5
  $region4: #{_lambda_.6} parent=0 // pred_region
    _
  $region5: #{_lambda_.6} parent=0 // pred_fallthru
    _
  // Predicated region
  $region6: #{_lambda_.6} parent=0 // pred_check
    _
  $region7: #{_lambda_.6} parent=0 // pred_check_branch
    %11 = sbr.rel (0) target = $region9
  $region8: #{_lambda_.6} parent=0 // pred_region
    _
  $region9: #{_lambda_.6} parent=0 // pred_fallthru
    _
  // Predicated region
  $region10: #{_lambda_.6} parent=0 // pred_check
    _
  $region11: #{_lambda_.6} parent=0 // pred_check_branch
    %13 = sbr.rel (0) target = $region13
  $region12: #{_lambda_.6} parent=0 // pred_region
    _
  $region13: #{_lambda_.6} parent=0 // pred_fallthru
    _
  %v14 = vld [vmem:[%s0] sm:$0xff]
  %v15 = vld [vmem:[%s0 + $0x8] sm:$0xff]
  %v16 = vld [vmem:[%s0 + $0x10] sm:$0xff]
  %v17 = vld [vmem:[%s0 + $0x18] sm:$0xff]
  %v18 = vld [vmem:[%s0 + $0x20] sm:$0xff]
  %v19 = vld [vmem:[%s0 + $0x28] sm:$0xff]
  %v20 = vld [vmem:[%s0 + $0x30] sm:$0xff]
  %v21 = vld [vmem:[%s0 + $0x38] sm:$0xff]
  %v22 = vld [vmem:[%s0 + $0x40] sm:$0xff]
  %v23 = vld [vmem:[%s0 + $0x48] sm:$0xff]
  %v24 = vld [vmem:[%s0 + $0x50] sm:$0xff]
  %v25 = vld [vmem:[%s0 + $0x58] sm:$0xff]
  %v26 = vld [vmem:[%s0 + $0x60] sm:$0xff]
  %v27 = vld [vmem:[%s0 + $0x68] sm:$0xff]
  %v28 = vld [vmem:[%s0 + $0x70] sm:$0xff]
  %v29 = vld [vmem:[%s0 + $0x78] sm:$0xff]
  %v30 = vld [vmem:[%s1] sm:$0x1]
  %v32 = vlaneseq
  %v33 = vshrl.u32 %v32, 7
  %v34 = vsub.s32 0, %v33
  %v35 = vrot.slane %v30, %v34
  %v37 = vmul.f32 %v14, %v35
  %v38 = vmul.f32 %v15, %v35
  %v39 = vmul.f32 %v16, %v35
  %v40 = vmul.f32 %v17, %v35
  %v41 = vmul.f32 %v18, %v35
  %v42 = vmul.f32 %v19, %v35
  %v43 = vmul.f32 %v20, %v35
  %v44 = vmul.f32 %v21, %v35
  %v45 = vmul.f32 %v22, %v35
  %v46 = vmul.f32 %v23, %v35
  %v47 = vmul.f32 %v24, %v35
  %v48 = vmul.f32 %v25, %v35
  %v49 = vmul.f32 %v26, %v35
  %v50 = vmul.f32 %v27, %v35
  %v51 = vmul.f32 %v28, %v35
  %v52 = vmul.f32 %v29, %v35
  %v53 = vld [vmem:[%s2] sm:$0x1]
  %v55 = vlaneseq
  %v56 = vshrl.u32 %v55, 7
  %v57 = vsub.s32 0, %v56
  %v58 = vrot.slane %v53, %v57
  %v60 = vadd.f32 %v37, %v58
  %v61 = vadd.f32 %v38, %v58
  %v62 = vadd.f32 %v39, %v58
  %v63 = vadd.f32 %v40, %v58
  %v64 = vadd.f32 %v41, %v58
  %v65 = vadd.f32 %v42, %v58
  %v66 = vadd.f32 %v43, %v58
  %v67 = vadd.f32 %v44, %v58
  %v68 = vadd.f32 %v45, %v58
  %v69 = vadd.f32 %v46, %v58
  %v70 = vadd.f32 %v47, %v58
  %v71 = vadd.f32 %v48, %v58
  %v72 = vadd.f32 %v49, %v58
  %v73 = vadd.f32 %v50, %v58
  %v74 = vadd.f32 %v51, %v58
  %v75 = vadd.f32 %v52, %v58
  %v76 = vmax.f32 %v60, 0.0
  %v77 = vmax.f32 %v61, 0.0
  %v78 = vmax.f32 %v62, 0.0
  %v79 = vmax.f32 %v63, 0.0
  %v80 = vmax.f32 %v64, 0.0
  %v81 = vmax.f32 %v65, 0.0
  %v82 = vmax.f32 %v66, 0.0
  %v83 = vmax.f32 %v67, 0.0
  %v84 = vmax.f32 %v68, 0.0
  %v85 = vmax.f32 %v69, 0.0
  %v86 = vmax.f32 %v70, 0.0
  %v87 = vmax.f32 %v71, 0.0
  %v88 = vmax.f32 %v72, 0.0
  %v89 = vmax.f32 %v73, 0.0
  %v90 = vmax.f32 %v74, 0.0
  %v91 = vmax.f32 %v75, 0.0
  %92 = vst [vmem:[%s3] sm:$0xff] %v76
  %93 = vst [vmem:[%s3 + $0x8] sm:$0xff] %v77
  %94 = vst [vmem:[%s3 + $0x10] sm:$0xff] %v78
  %95 = vst [vmem:[%s3 + $0x18] sm:$0xff] %v79
  %96 = vst [vmem:[%s3 + $0x20] sm:$0xff] %v80
  %97 = vst [vmem:[%s3 + $0x28] sm:$0xff] %v81
  %98 = vst [vmem:[%s3 + $0x30] sm:$0xff] %v82
  %99 = vst [vmem:[%s3 + $0x38] sm:$0xff] %v83
  %100 = vst [vmem:[%s3 + $0x40] sm:$0xff] %v84
  %101 = vst [vmem:[%s3 + $0x48] sm:$0xff] %v85
  %102 = vst [vmem:[%s3 + $0x50] sm:$0xff] %v86
  %103 = vst [vmem:[%s3 + $0x58] sm:$0xff] %v87
  %104 = vst [vmem:[%s3 + $0x60] sm:$0xff] %v88
  %105 = vst [vmem:[%s3 + $0x68] sm:$0xff] %v89
  %106 = vst [vmem:[%s3 + $0x70] sm:$0xff] %v90
  %107 = vst [vmem:[%s3 + $0x78] sm:$0xff] %v91
  // Predicated region
  $region14: #{_lambda_.6} parent=0 // pred_check
    _
  $region15: #{_lambda_.6} parent=0 // pred_check_branch
    %109 = sbr.rel (0) target = $region17
  $region16: #{_lambda_.6} parent=0 // pred_region
    _
  $region17: #{_lambda_.6} parent=0 // pred_fallthru
    _
  // Predicated region
  $region18: #{_lambda_.6} parent=0 // pred_check
    _
  $region19: #{_lambda_.6} parent=0 // pred_check_branch
    %111 = sbr.rel (0) target = $region21
  $region20: #{_lambda_.6} parent=0 // pred_region
    _
  $region21: #{_lambda_.6} parent=0 // pred_fallthru
    _

// kernel: _lambda_.5
$region0: #{_lambda_.5}
  #allocation0 [shape = 'u32[]', space=smem, size = 0x4, offset = 0x4, fixed_abs, tag = 'smem constant byte address 0x4 - core index']
  #allocation1 [shape = 'u32[144,128]{1,0:T(1,128)}', space=vmem, size = 0x12000, scoped, tag = 'internal scratch']
  %s0 = inlined_call_operand.vmem [shape: bf16[128,128], index: 0, kind: input, shape index: {}]
  %s1 = inlined_call_operand.vmem [shape: bf16[128,128], index: 1, kind: input, shape index: {}]
  %s2 = inlined_call_operand.vmem [shape: f32[1,128], index: 2, kind: input, shape index: {}]
  %s3 = inlined_call_operand.vmem [shape: f32[128,128], index: 3, kind: output, shape index: {0}]
  %s4 = inlined_call_operand.vmem [shape: f32[1,8,128], index: 4, kind: output, shape index: {1}]
  %5 = xla_tuple %s3, %s4
  %s6 = sld [smem:[#allocation0]]
  $region30: #{_lambda_.5} parent=0
    _
  %s8 = ssub.s32 1, %s6
  %s9 = scalar_select 0, %s8, %s6
  // Predicated region
  $region2: #{_lambda_.5} parent=0 // pred_check
    _
  $region3: #{_lambda_.5} parent=0 // pred_check_branch
    %11 = sbr.rel (0) target = $region5
  $region4: #{_lambda_.5} parent=0 // pred_region
    _
  $region5: #{_lambda_.5} parent=0 // pred_fallthru
    _
  // Predicated region
  $region6: #{_lambda_.5} parent=0 // pred_check
    _
  $region7: #{_lambda_.5} parent=0 // pred_check_branch
    %13 = sbr.rel (0) target = $region9
  $region8: #{_lambda_.5} parent=0 // pred_region
    _
  $region9: #{_lambda_.5} parent=0 // pred_fallthru
    _
  // Predicated region
  $region10: #{_lambda_.5} parent=0 // pred_check
    _
  $region11: #{_lambda_.5} parent=0 // pred_check_branch
    %15 = sbr.rel (0) target = $region13
  $region12: #{_lambda_.5} parent=0 // pred_region
    _
  $region13: #{_lambda_.5} parent=0 // pred_fallthru
    _
  %v17 = vld [vmem:[%s0] sm:$0xf]
  %v18 = vld [vmem:[%s0 + $0x4] sm:$0xf]
  %v19 = vld [vmem:[%s0 + $0x8] sm:$0xf]
  %v20 = vld [vmem:[%s0 + $0xc] sm:$0xf]
  %v21 = vld [vmem:[%s0 + $0x10] sm:$0xf]
  %v22 = vld [vmem:[%s0 + $0x14] sm:$0xf]
  %v23 = vld [vmem:[%s0 + $0x18] sm:$0xf]
  %v24 = vld [vmem:[%s0 + $0x1c] sm:$0xf]
  %v25 = vld [vmem:[%s0 + $0x20] sm:$0xf]
  %v26 = vld [vmem:[%s0 + $0x24] sm:$0xf]
  %v27 = vld [vmem:[%s0 + $0x28] sm:$0xf]
  %v28 = vld [vmem:[%s0 + $0x2c] sm:$0xf]
  %v29 = vld [vmem:[%s0 + $0x30] sm:$0xf]
  %v30 = vld [vmem:[%s0 + $0x34] sm:$0xf]
  %v31 = vld [vmem:[%s0 + $0x38] sm:$0xf]
  %v32 = vld [vmem:[%s0 + $0x3c] sm:$0xf]
  %v33 = vld [vmem:[%s1] sm:$0xf]
  %v34 = vld [vmem:[%s1 + $0x4] sm:$0xf]
  %v35 = vld [vmem:[%s1 + $0x8] sm:$0xf]
  %v36 = vld [vmem:[%s1 + $0xc] sm:$0xf]
  %v37 = vld [vmem:[%s1 + $0x10] sm:$0xf]
  %v38 = vld [vmem:[%s1 + $0x14] sm:$0xf]
  %v39 = vld [vmem:[%s1 + $0x18] sm:$0xf]
  %v40 = vld [vmem:[%s1 + $0x1c] sm:$0xf]
  %v41 = vld [vmem:[%s1 + $0x20] sm:$0xf]
  %v42 = vld [vmem:[%s1 + $0x24] sm:$0xf]
  %v43 = vld [vmem:[%s1 + $0x28] sm:$0xf]
  %v44 = vld [vmem:[%s1 + $0x2c] sm:$0xf]
  %v45 = vld [vmem:[%s1 + $0x30] sm:$0xf]
  %v46 = vld [vmem:[%s1 + $0x34] sm:$0xf]
  %v47 = vld [vmem:[%s1 + $0x38] sm:$0xf]
  %v48 = vld [vmem:[%s1 + $0x3c] sm:$0xf]
  %v49 = vld [vmem:[%s2] sm:$0x1]
  %v51 = vlaneseq
  %v52 = vshrl.u32 %v51, 7
  %v53 = vsub.s32 0, %v52
  %v54 = vrot.slane %v49, %v53
  %v72 = vunpack.c.l.b16 %v17
  %v73 = vunpack.c.l.b16 %v18
  %v74 = vunpack.c.l.b16 %v19
  %v75 = vunpack.c.l.b16 %v20
  %v76 = vunpack.c.l.b16 %v21
  %v77 = vunpack.c.l.b16 %v22
  %v78 = vunpack.c.l.b16 %v23
  %v79 = vunpack.c.l.b16 %v24
  %v80 = vunpack.c.l.b16 %v25
  %v81 = vunpack.c.l.b16 %v26
  %v82 = vunpack.c.l.b16 %v27
  %v83 = vunpack.c.l.b16 %v28
  %v84 = vunpack.c.l.b16 %v29
  %v85 = vunpack.c.l.b16 %v30
  %v86 = vunpack.c.l.b16 %v31
  %v87 = vunpack.c.l.b16 %v32
  %v88 = vpack.c.b16 %v73, %v72
  %v89 = vpack.c.b16 %v75, %v74
  %v90 = vpack.c.b16 %v77, %v76
  %v91 = vpack.c.b16 %v79, %v78
  %v92 = vpack.c.b16 %v81, %v80
  %v93 = vpack.c.b16 %v83, %v82
  %v94 = vpack.c.b16 %v85, %v84
  %v95 = vpack.c.b16 %v87, %v86
  %v120 = vunpack.c.l.b16 %v33
  %v121 = vunpack.c.l.b16 %v34
  %v122 = vunpack.c.l.b16 %v35
  %v123 = vunpack.c.l.b16 %v36
  %v124 = vunpack.c.l.b16 %v37
  %v125 = vunpack.c.l.b16 %v38
  %v126 = vunpack.c.l.b16 %v39
  %v127 = vunpack.c.l.b16 %v40
  %v128 = vunpack.c.l.b16 %v41
  %v129 = vunpack.c.l.b16 %v42
  %v130 = vunpack.c.l.b16 %v43
  %v131 = vunpack.c.l.b16 %v44
  %v132 = vunpack.c.l.b16 %v45
  %v133 = vunpack.c.l.b16 %v46
  %v134 = vunpack.c.l.b16 %v47
  %v135 = vunpack.c.l.b16 %v48
  %v136 = vpack.c.b16 %v121, %v120
  %v137 = vpack.c.b16 %v123, %v122
  %v138 = vpack.c.b16 %v125, %v124
  %v139 = vpack.c.b16 %v127, %v126
  %v140 = vpack.c.b16 %v129, %v128
  %v141 = vpack.c.b16 %v131, %v130
  %v142 = vpack.c.b16 %v133, %v132
  %v143 = vpack.c.b16 %v135, %v134
  %152 = vmatprep.subr.bf16.mxu0 0
  %153 = vmatpush1.bf16.msra.mxu0 %v136
  %154 = vmatprep.subr.bf16.mxu0 0
  %155 = vmatpush1.bf16.msra.mxu0 %v137
  %156 = vmatprep.subr.bf16.mxu0 0
  %157 = vmatpush1.bf16.msra.mxu0 %v138
  %158 = vmatprep.subr.bf16.mxu0 0
  %159 = vmatpush1.bf16.msra.mxu0 %v139
  %160 = vmatprep.subr.bf16.mxu0 0
  %161 = vmatpush1.bf16.msra.mxu0 %v140
  %162 = vmatprep.subr.bf16.mxu0 0
  %163 = vmatpush1.bf16.msra.mxu0 %v141
  %164 = vmatprep.subr.bf16.mxu0 0
  %165 = vmatpush1.bf16.msra.mxu0 %v142
  %166 = vmatprep.subr.bf16.mxu0 0
  %167 = vmatpush1.bf16.msra.mxu0 %v143
  %168 = vmatprep.subr.bf16.mxu0 0
  %169 = vmatpush1.bf16.msra.mxu0 0
  %170 = vmatprep.subr.bf16.mxu0 0
  %171 = vmatpush1.bf16.msra.mxu0 0
  %172 = vmatprep.subr.bf16.mxu0 0
  %173 = vmatpush1.bf16.msra.mxu0 0
  %174 = vmatprep.subr.bf16.mxu0 0
  %175 = vmatpush1.bf16.msra.mxu0 0
  %176 = vmatprep.subr.bf16.mxu0 0
  %177 = vmatpush1.bf16.msra.mxu0 0
  %178 = vmatprep.subr.bf16.mxu0 0
  %179 = vmatpush1.bf16.msra.mxu0 0
  %180 = vmatprep.subr.bf16.mxu0 0
  %181 = vmatpush1.bf16.msra.mxu0 0
  %182 = vmatprep.subr.bf16.mxu0 0
  %183 = vmatpush1.bf16.msra.mxu0 0
  %184 = vmatprep.mubr.bf16.mxu0 0
  %185 = vmatmul.mubr.bf16.gmra.mrb[0].mxu0 %v88
  %v186 = vpop.f32.mrb[0].mxu0
  %v187 = vadd.f32 %v54, %v186
  %v188 = vpop.f32.mrb[0].mxu0
  %v189 = vpop.f32.mrb[0].mxu0
  %v190 = vadd.f32 %v54, %v189
  %v191 = vpop.f32.mrb[0].mxu0
  %192 = vmatprep.mubr.bf16.mxu0 0
  %193 = vmatmul.mubr.bf16.gmra.mrb[0].mxu0 %v89
  %v194 = vpop.f32.mrb[0].mxu0
  %v195 = vadd.f32 %v54, %v194
  %v196 = vpop.f32.mrb[0].mxu0
  %v197 = vpop.f32.mrb[0].mxu0
  %v198 = vadd.f32 %v54, %v197
  %v199 = vpop.f32.mrb[0].mxu0
  %200 = vmatprep.mubr.bf16.mxu0 0
  %201 = vmatmul.mubr.bf16.gmra.mrb[0].mxu0 %v90
  %v202 = vpop.f32.mrb[0].mxu0
  %v203 = vadd.f32 %v54, %v202
  %v204 = vpop.f32.mrb[0].mxu0
  %v205 = vpop.f32.mrb[0].mxu0
  %v206 = vadd.f32 %v54, %v205
  %v207 = vpop.f32.mrb[0].mxu0
  %208 = vmatprep.mubr.bf16.mxu0 0
  %209 = vmatmul.mubr.bf16.gmra.mrb[0].mxu0 %v91
  %v210 = vpop.f32.mrb[0].mxu0
  %v211 = vadd.f32 %v54, %v210
  %v212 = vpop.f32.mrb[0].mxu0
  %v213 = vpop.f32.mrb[0].mxu0
  %v214 = vadd.f32 %v54, %v213
  %v215 = vpop.f32.mrb[0].mxu0
  %216 = vmatprep.mubr.bf16.mxu0 0
  %217 = vmatmul.mubr.bf16.gmra.mrb[0].mxu0 %v92
  %v218 = vpop.f32.mrb[0].mxu0
  %v219 = vadd.f32 %v54, %v218
  %v220 = vpop.f32.mrb[0].mxu0
  %v221 = vpop.f32.mrb[0].mxu0
  %v222 = vadd.f32 %v54, %v221
  %v223 = vpop.f32.mrb[0].mxu0
  %224 = vmatprep.mubr.bf16.mxu0 0
  %225 = vmatmul.mubr.bf16.gmra.mrb[0].mxu0 %v93
  %v226 = vpop.f32.mrb[0].mxu0
  %v227 = vadd.f32 %v54, %v226
  %v228 = vpop.f32.mrb[0].mxu0
  %v229 = vpop.f32.mrb[0].mxu0
  %v230 = vadd.f32 %v54, %v229
  %v231 = vpop.f32.mrb[0].mxu0
  %232 = vmatprep.mubr.bf16.mxu0 0
  %233 = vmatmul.mubr.bf16.gmra.mrb[0].mxu0 %v94
  %v234 = vpop.f32.mrb[0].mxu0
  %v235 = vadd.f32 %v54, %v234
  %v236 = vpop.f32.mrb[0].mxu0
  %v237 = vpop.f32.mrb[0].mxu0
  %v238 = vadd.f32 %v54, %v237
  %v239 = vpop.f32.mrb[0].mxu0
  %240 = vmatprep.mubr.bf16.mxu0 0
  %241 = vmatmul.mubr.bf16.gmra.mrb[0].mxu0 %v95
  %v242 = vpop.f32.mrb[0].mxu0
  %v243 = vadd.f32 %v54, %v242
  %v244 = vpop.f32.mrb[0].mxu0
  %v245 = vpop.f32.mrb[0].mxu0
  %v246 = vadd.f32 %v54, %v245
  %v247 = vpop.f32.mrb[0].mxu0
  %248 = vdwg.mxu0
  %249 = vst [vmem:[%s3] sm:$0xff] %v187
  %250 = vst [vmem:[%s3 + $0x8] sm:$0xff] %v190
  %251 = vst [vmem:[%s3 + $0x10] sm:$0xff] %v195
  %252 = vst [vmem:[%s3 + $0x18] sm:$0xff] %v198
  %253 = vst [vmem:[%s3 + $0x20] sm:$0xff] %v203
  %254 = vst [vmem:[%s3 + $0x28] sm:$0xff] %v206
  %255 = vst [vmem:[%s3 + $0x30] sm:$0xff] %v211
  %256 = vst [vmem:[%s3 + $0x38] sm:$0xff] %v214
  %257 = vst [vmem:[%s3 + $0x40] sm:$0xff] %v219
  %258 = vst [vmem:[%s3 + $0x48] sm:$0xff] %v222
  %259 = vst [vmem:[%s3 + $0x50] sm:$0xff] %v227
  %260 = vst [vmem:[%s3 + $0x58] sm:$0xff] %v230
  %261 = vst [vmem:[%s3 + $0x60] sm:$0xff] %v235
  %262 = vst [vmem:[%s3 + $0x68] sm:$0xff] %v238
  %263 = vst [vmem:[%s3 + $0x70] sm:$0xff] %v243
  %264 = vst [vmem:[%s3 + $0x78] sm:$0xff] %v246
  %v265 = vadd.f32 %v187, %v190
  %v266 = vadd.f32 %v265, %v195
  %v267 = vadd.f32 %v266, %v198
  %v268 = vadd.f32 %v267, %v203
  %v269 = vadd.f32 %v268, %v206
  %v270 = vadd.f32 %v269, %v211
  %v271 = vadd.f32 %v270, %v214
  %v272 = vadd.f32 %v271, %v219
  %v273 = vadd.f32 %v272, %v222
  %v274 = vadd.f32 %v273, %v227
  %v275 = vadd.f32 %v274, %v230
  %v276 = vadd.f32 %v275, %v235
  %v277 = vadd.f32 %v276, %v238
  %v278 = vadd.f32 %v277, %v243
  %v279 = vadd.f32 %v278, %v246
  %v280 = vrot.slane %v279, 4
  %v281 = vadd.f32 %v279, %v280
  %v282 = vrot.slane %v281, 2
  %v283 = vadd.f32 %v281, %v282
  %v284 = vrot.slane %v283, 1
  %v285 = vadd.f32 %v283, %v284
  %v286 = vmul.f32 %v187, %v187
  %v287 = vmul.f32 %v190, %v190
  %v288 = vmul.f32 %v195, %v195
  %v289 = vmul.f32 %v198, %v198
  %v290 = vmul.f32 %v203, %v203
  %v291 = vmul.f32 %v206, %v206
  %v292 = vmul.f32 %v211, %v211
  %v293 = vmul.f32 %v214, %v214
  %v294 = vmul.f32 %v219, %v219
  %v295 = vmul.f32 %v222, %v222
  %v296 = vmul.f32 %v227, %v227
  %v297 = vmul.f32 %v230, %v230
  %v298 = vmul.f32 %v235, %v235
  %v299 = vmul.f32 %v238, %v238
  %v300 = vmul.f32 %v243, %v243
  %v301 = vmul.f32 %v246, %v246
  %v302 = vadd.f32 %v286, %v287
  %v303 = vadd.f32 %v302, %v288
  %v304 = vadd.f32 %v303, %v289
  %v305 = vadd.f32 %v304, %v290
  %v306 = vadd.f32 %v305, %v291
  %v307 = vadd.f32 %v306, %v292
  %v308 = vadd.f32 %v307, %v293
  %v309 = vadd.f32 %v308, %v294
  %v310 = vadd.f32 %v309, %v295
  %v311 = vadd.f32 %v310, %v296
  %v312 = vadd.f32 %v311, %v297
  %v313 = vadd.f32 %v312, %v298
  %v314 = vadd.f32 %v313, %v299
  %v315 = vadd.f32 %v314, %v300
  %v316 = vadd.f32 %v315, %v301
  %v317 = vrot.slane %v316, 4
  %v318 = vadd.f32 %v316, %v317
  %v319 = vrot.slane %v318, 2
  %v320 = vadd.f32 %v318, %v319
  %v321 = vrot.slane %v320, 1
  %v322 = vadd.f32 %v320, %v321
  %vm323 = vcmask 1040384
  %v324 = vsel %vm323, %v285, %v322
  %vm325 = vcmask 1041408
  %v326 = vsel %vm325, %v324, 0.0
  %327 = vst [vmem:[%s4] sm:$0xff] %v326
  // Predicated region
  $region14: #{_lambda_.5} parent=0 // pred_check
    _
  $region15: #{_lambda_.5} parent=0 // pred_check_branch
    %329 = sbr.rel (0) target = $region17
  $region16: #{_lambda_.5} parent=0 // pred_region
    _
  $region17: #{_lambda_.5} parent=0 // pred_fallthru
    _
  // Predicated region
  $region18: #{_lambda_.5} parent=0 // pred_check
    _
  $region19: #{_lambda_.5} parent=0 // pred_check_branch
    %331 = sbr.rel (0) target = $region21
  $region20: #{_lambda_.5} parent=0 // pred_region
    _
  $region21: #{_lambda_.5} parent=0 // pred_fallthru
    _
  // Predicated region
  $region22: #{_lambda_.5} parent=0 // pred_check
    _
  $region23: #{_lambda_.5} parent=0 // pred_check_branch
    %333 = sbr.rel (0) target = $region25
  $region24: #{_lambda_.5} parent=0 // pred_region
    _
  $region25: #{_lambda_.5} parent=0 // pred_fallthru
    _
  // Predicated region
  $region26: #{_lambda_.5} parent=0 // pred_check
    _
  $region27: #{_lambda_.5} parent=0 // pred_check_branch
    %335 = sbr.rel (0) target = $region29
  $region28: #{_lambda_.5} parent=0 // pred_region
    _
  $region29: #{_lambda_.5} parent=0 // pred_fallthru
    _

// kernel: _lambda_.9
$region0: #{_lambda_.9}
  #allocation0 [shape = 'u32[]', space=smem, size = 0x4, offset = 0x4, fixed_abs, tag = 'smem constant byte address 0x4 - core index']
  #allocation1 [shape = 'u32[144,128]{1,0:T(1,128)}', space=vmem, size = 0x12000, scoped, tag = 'internal scratch']
  %s0 = inlined_call_operand.vmem [shape: f32[128,128], index: 0, kind: input, shape index: {}]
  %s1 = inlined_call_operand.vmem [shape: f32[1,128], index: 1, kind: input, shape index: {}]
  %s2 = inlined_call_operand.vmem [shape: f32[1,128], index: 2, kind: input, shape index: {}]
  %s3 = inlined_call_operand.vmem [shape: f32[128,128], index: 3, kind: input, shape index: {}]
  %s4 = inlined_call_operand.hbm [shape: f32[128,128], index: 4, kind: output, shape index: {}]
  %s5 = sld [smem:[#allocation0]]
  $region26: #{_lambda_.9} parent=0
    _
  %s7 = ssub.s32 1, %s5
  %s8 = scalar_select 0, %s7, %s5
  $region1: #{_lambda_.9} parent=0
    #allocation2 [shape = 'u8[65536]{0}', space=vmem, size = 0x10000, scoped, tag = 'output window, operand 0, single buffered']
    #allocation3 [shape = 's32[1]{0}', space=sflag, size = 0x4, scoped, tag = 'scoped memory for _lambda_.9']
    %9 = vsyncpa [#allocation3], 0
    // Predicated region
    $region2: #{_lambda_.9} parent=1 // pred_check
      _
    $region3: #{_lambda_.9} parent=1 // pred_check_branch
      %11 = sbr.rel (0) target = $region5
    $region4: #{_lambda_.9} parent=1 // pred_region
      _
    $region5: #{_lambda_.9} parent=1 // pred_fallthru
      _
    // Predicated region
    $region6: #{_lambda_.9} parent=1 // pred_check
      _
    $region7: #{_lambda_.9} parent=1 // pred_check_branch
      %13 = sbr.rel (0) target = $region9
    $region8: #{_lambda_.9} parent=1 // pred_region
      _
    $region9: #{_lambda_.9} parent=1 // pred_fallthru
      _
    // Predicated region
    $region10: #{_lambda_.9} parent=1 // pred_check
      _
    $region11: #{_lambda_.9} parent=1 // pred_check_branch
      %15 = sbr.rel (0) target = $region13
    $region12: #{_lambda_.9} parent=1 // pred_region
      _
    $region13: #{_lambda_.9} parent=1 // pred_fallthru
      _
    // Predicated region
    $region14: #{_lambda_.9} parent=1 // pred_check
      _
    $region15: #{_lambda_.9} parent=1 // pred_check_branch
      %17 = sbr.rel (0) target = $region17
    $region16: #{_lambda_.9} parent=1 // pred_region
      _
    $region17: #{_lambda_.9} parent=1 // pred_fallthru
      _
    %v18 = vld [vmem:[%s0] sm:$0xff]
    %v19 = vld [vmem:[%s0 + $0x8] sm:$0xff]
    %v20 = vld [vmem:[%s0 + $0x10] sm:$0xff]
    %v21 = vld [vmem:[%s0 + $0x18] sm:$0xff]
    %v22 = vld [vmem:[%s0 + $0x20] sm:$0xff]
    %v23 = vld [vmem:[%s0 + $0x28] sm:$0xff]
    %v24 = vld [vmem:[%s0 + $0x30] sm:$0xff]
    %v25 = vld [vmem:[%s0 + $0x38] sm:$0xff]
    %v26 = vld [vmem:[%s0 + $0x40] sm:$0xff]
    %v27 = vld [vmem:[%s0 + $0x48] sm:$0xff]
    %v28 = vld [vmem:[%s0 + $0x50] sm:$0xff]
    %v29 = vld [vmem:[%s0 + $0x58] sm:$0xff]
    %v30 = vld [vmem:[%s0 + $0x60] sm:$0xff]
    %v31 = vld [vmem:[%s0 + $0x68] sm:$0xff]
    %v32 = vld [vmem:[%s0 + $0x70] sm:$0xff]
    %v33 = vld [vmem:[%s0 + $0x78] sm:$0xff]
    %v34 = vld [vmem:[%s1] sm:$0x1]
    %v36 = vlaneseq
    %v37 = vshrl.u32 %v36, 7
    %v38 = vsub.s32 0, %v37
    %v39 = vrot.slane %v34, %v38
    %v41 = vmul.f32 %v18, %v39
    %v42 = vmul.f32 %v19, %v39
    %v43 = vmul.f32 %v20, %v39
    %v44 = vmul.f32 %v21, %v39
    %v45 = vmul.f32 %v22, %v39
    %v46 = vmul.f32 %v23, %v39
    %v47 = vmul.f32 %v24, %v39
    %v48 = vmul.f32 %v25, %v39
    %v49 = vmul.f32 %v26, %v39
    %v50 = vmul.f32 %v27, %v39
    %v51 = vmul.f32 %v28, %v39
    %v52 = vmul.f32 %v29, %v39
    %v53 = vmul.f32 %v30, %v39
    %v54 = vmul.f32 %v31, %v39
    %v55 = vmul.f32 %v32, %v39
    %v56 = vmul.f32 %v33, %v39
    %v57 = vld [vmem:[%s2] sm:$0x1]
    %v59 = vlaneseq
    %v60 = vshrl.u32 %v59, 7
    %v61 = vsub.s32 0, %v60
    %v62 = vrot.slane %v57, %v61
    %v64 = vadd.f32 %v41, %v62
    %v65 = vadd.f32 %v42, %v62
    %v66 = vadd.f32 %v43, %v62
    %v67 = vadd.f32 %v44, %v62
    %v68 = vadd.f32 %v45, %v62
    %v69 = vadd.f32 %v46, %v62
    %v70 = vadd.f32 %v47, %v62
    %v71 = vadd.f32 %v48, %v62
    %v72 = vadd.f32 %v49, %v62
    %v73 = vadd.f32 %v50, %v62
    %v74 = vadd.f32 %v51, %v62
    %v75 = vadd.f32 %v52, %v62
    %v76 = vadd.f32 %v53, %v62
    %v77 = vadd.f32 %v54, %v62
    %v78 = vadd.f32 %v55, %v62
    %v79 = vadd.f32 %v56, %v62
    %v80 = vld [vmem:[%s3] sm:$0xff]
    %v81 = vld [vmem:[%s3 + $0x8] sm:$0xff]
    %v82 = vld [vmem:[%s3 + $0x10] sm:$0xff]
    %v83 = vld [vmem:[%s3 + $0x18] sm:$0xff]
    %v84 = vld [vmem:[%s3 + $0x20] sm:$0xff]
    %v85 = vld [vmem:[%s3 + $0x28] sm:$0xff]
    %v86 = vld [vmem:[%s3 + $0x30] sm:$0xff]
    %v87 = vld [vmem:[%s3 + $0x38] sm:$0xff]
    %v88 = vld [vmem:[%s3 + $0x40] sm:$0xff]
    %v89 = vld [vmem:[%s3 + $0x48] sm:$0xff]
    %v90 = vld [vmem:[%s3 + $0x50] sm:$0xff]
    %v91 = vld [vmem:[%s3 + $0x58] sm:$0xff]
    %v92 = vld [vmem:[%s3 + $0x60] sm:$0xff]
    %v93 = vld [vmem:[%s3 + $0x68] sm:$0xff]
    %v94 = vld [vmem:[%s3 + $0x70] sm:$0xff]
    %v95 = vld [vmem:[%s3 + $0x78] sm:$0xff]
    %v96 = vadd.f32 %v64, %v80
    %v97 = vadd.f32 %v65, %v81
    %v98 = vadd.f32 %v66, %v82
    %v99 = vadd.f32 %v67, %v83
    %v100 = vadd.f32 %v68, %v84
    %v101 = vadd.f32 %v69, %v85
    %v102 = vadd.f32 %v70, %v86
    %v103 = vadd.f32 %v71, %v87
    %v104 = vadd.f32 %v72, %v88
    %v105 = vadd.f32 %v73, %v89
    %v106 = vadd.f32 %v74, %v90
    %v107 = vadd.f32 %v75, %v91
    %v108 = vadd.f32 %v76, %v92
    %v109 = vadd.f32 %v77, %v93
    %v110 = vadd.f32 %v78, %v94
    %v111 = vadd.f32 %v79, %v95
    %v112 = vmax.f32 %v96, 0.0
    %v113 = vmax.f32 %v97, 0.0
    %v114 = vmax.f32 %v98, 0.0
    %v115 = vmax.f32 %v99, 0.0
    %v116 = vmax.f32 %v100, 0.0
    %v117 = vmax.f32 %v101, 0.0
    %v118 = vmax.f32 %v102, 0.0
    %v119 = vmax.f32 %v103, 0.0
    %v120 = vmax.f32 %v104, 0.0
    %v121 = vmax.f32 %v105, 0.0
    %v122 = vmax.f32 %v106, 0.0
    %v123 = vmax.f32 %v107, 0.0
    %v124 = vmax.f32 %v108, 0.0
    %v125 = vmax.f32 %v109, 0.0
    %v126 = vmax.f32 %v110, 0.0
    %v127 = vmax.f32 %v111, 0.0
    %128 = vst [vmem:[#allocation2] sm:$0xff] %v112
    %129 = vst [vmem:[#allocation2 + $0x8] sm:$0xff] %v113
    %130 = vst [vmem:[#allocation2 + $0x10] sm:$0xff] %v114
    %131 = vst [vmem:[#allocation2 + $0x18] sm:$0xff] %v115
    %132 = vst [vmem:[#allocation2 + $0x20] sm:$0xff] %v116
    %133 = vst [vmem:[#allocation2 + $0x28] sm:$0xff] %v117
    %134 = vst [vmem:[#allocation2 + $0x30] sm:$0xff] %v118
    %135 = vst [vmem:[#allocation2 + $0x38] sm:$0xff] %v119
    %136 = vst [vmem:[#allocation2 + $0x40] sm:$0xff] %v120
    %137 = vst [vmem:[#allocation2 + $0x48] sm:$0xff] %v121
    %138 = vst [vmem:[#allocation2 + $0x50] sm:$0xff] %v122
    %139 = vst [vmem:[#allocation2 + $0x58] sm:$0xff] %v123
    %140 = vst [vmem:[#allocation2 + $0x60] sm:$0xff] %v124
    %141 = vst [vmem:[#allocation2 + $0x68] sm:$0xff] %v125
    %142 = vst [vmem:[#allocation2 + $0x70] sm:$0xff] %v126
    %143 = vst [vmem:[#allocation2 + $0x78] sm:$0xff] %v127
    // Predicated region
    $region18: #{_lambda_.9} parent=1 // pred_check
      _
    $region19: #{_lambda_.9} parent=1 // pred_check_branch
      %145 = sbr.rel (0) target = $region21
    $region20: #{_lambda_.9} parent=1 // pred_region
      %s147 = ssub.s32 2048, 2048
      %148 = vsyncadd [#allocation3], %s147
      %s149 = sshll.u32 [#allocation2], 4
      %s150 = int_to_ptr.vmem [resolvable:$true] %s149
      %155 = dma.vmem_to_hbm [thread:$0]  %s150, 2048, %s4, [#allocation3], 128, 128, 8
    $region21: #{_lambda_.9} parent=1 // pred_fallthru
      _
    // Predicated region
    $region22: #{_lambda_.9} parent=1 // pred_check
      _
    $region23: #{_lambda_.9} parent=1 // pred_check_branch
      %157 = sbr.rel (0) target = $region25
    $region24: #{_lambda_.9} parent=1 // pred_region
      %158 = dma.done [#allocation3], 2048
    $region25: #{_lambda_.9} parent=1 // pred_fallthru
      _
    %159 = vsyncpa [#allocation3], 1

// kernel: _lambda_.8
$region0: #{_lambda_.8}
  #allocation0 [shape = 'u32[]', space=smem, size = 0x4, offset = 0x4, fixed_abs, tag = 'smem constant byte address 0x4 - core index']
  #allocation1 [shape = 'u32[144,128]{1,0:T(1,128)}', space=vmem, size = 0x12000, scoped, tag = 'internal scratch']
  %s0 = inlined_call_operand.vmem [shape: bf16[128,256], index: 0, kind: input, shape index: {}]
  %s1 = inlined_call_operand.vmem [shape: bf16[256,128], index: 1, kind: input, shape index: {}]
  %s2 = inlined_call_operand.vmem [shape: f32[1,128], index: 2, kind: input, shape index: {}]
  %s3 = inlined_call_operand.vmem [shape: f32[128,128], index: 3, kind: output, shape index: {0}]
  %s4 = inlined_call_operand.vmem [shape: f32[1,8,128], index: 4, kind: output, shape index: {1}]
  %5 = xla_tuple %s3, %s4
  %s6 = sld [smem:[#allocation0]]
  $region30: #{_lambda_.8} parent=0
    _
  %s8 = ssub.s32 1, %s6
  %s9 = scalar_select 0, %s8, %s6
  // Predicated region
  $region2: #{_lambda_.8} parent=0 // pred_check
    _
  $region3: #{_lambda_.8} parent=0 // pred_check_branch
    %11 = sbr.rel (0) target = $region5
  $region4: #{_lambda_.8} parent=0 // pred_region
    _
  $region5: #{_lambda_.8} parent=0 // pred_fallthru
    _
  // Predicated region
  $region6: #{_lambda_.8} parent=0 // pred_check
    _
  $region7: #{_lambda_.8} parent=0 // pred_check_branch
    %13 = sbr.rel (0) target = $region9
  $region8: #{_lambda_.8} parent=0 // pred_region
    _
  $region9: #{_lambda_.8} parent=0 // pred_fallthru
    _
  // Predicated region
  $region10: #{_lambda_.8} parent=0 // pred_check
    _
  $region11: #{_lambda_.8} parent=0 // pred_check_branch
    %15 = sbr.rel (0) target = $region13
  $region12: #{_lambda_.8} parent=0 // pred_region
    _
  $region13: #{_lambda_.8} parent=0 // pred_fallthru
    _
  %v17 = vld [vmem:[%s0] sm:$0xff]
  %v18 = vld [vmem:[%s0 + $0x8] sm:$0xff]
  %v19 = vld [vmem:[%s0 + $0x10] sm:$0xff]
  %v20 = vld [vmem:[%s0 + $0x18] sm:$0xff]
  %v21 = vld [vmem:[%s0 + $0x20] sm:$0xff]
  %v22 = vld [vmem:[%s0 + $0x28] sm:$0xff]
  %v23 = vld [vmem:[%s0 + $0x30] sm:$0xff]
  %v24 = vld [vmem:[%s0 + $0x38] sm:$0xff]
  %v25 = vld [vmem:[%s0 + $0x40] sm:$0xff]
  %v26 = vld [vmem:[%s0 + $0x48] sm:$0xff]
  %v27 = vld [vmem:[%s0 + $0x50] sm:$0xff]
  %v28 = vld [vmem:[%s0 + $0x58] sm:$0xff]
  %v29 = vld [vmem:[%s0 + $0x60] sm:$0xff]
  %v30 = vld [vmem:[%s0 + $0x68] sm:$0xff]
  %v31 = vld [vmem:[%s0 + $0x70] sm:$0xff]
  %v32 = vld [vmem:[%s0 + $0x78] sm:$0xff]
  %v33 = vld [vmem:[%s1] sm:$0xf]
  %v34 = vld [vmem:[%s1 + $0x4] sm:$0xf]
  %v35 = vld [vmem:[%s1 + $0x8] sm:$0xf]
  %v36 = vld [vmem:[%s1 + $0xc] sm:$0xf]
  %v37 = vld [vmem:[%s1 + $0x10] sm:$0xf]
  %v38 = vld [vmem:[%s1 + $0x14] sm:$0xf]
  %v39 = vld [vmem:[%s1 + $0x18] sm:$0xf]
  %v40 = vld [vmem:[%s1 + $0x1c] sm:$0xf]
  %v41 = vld [vmem:[%s1 + $0x20] sm:$0xf]
  %v42 = vld [vmem:[%s1 + $0x24] sm:$0xf]
  %v43 = vld [vmem:[%s1 + $0x28] sm:$0xf]
  %v44 = vld [vmem:[%s1 + $0x2c] sm:$0xf]
  %v45 = vld [vmem:[%s1 + $0x30] sm:$0xf]
  %v46 = vld [vmem:[%s1 + $0x34] sm:$0xf]
  %v47 = vld [vmem:[%s1 + $0x38] sm:$0xf]
  %v48 = vld [vmem:[%s1 + $0x3c] sm:$0xf]
  %v49 = vld [vmem:[%s1 + $0x40] sm:$0xf]
  %v50 = vld [vmem:[%s1 + $0x44] sm:$0xf]
  %v51 = vld [vmem:[%s1 + $0x48] sm:$0xf]
  %v52 = vld [vmem:[%s1 + $0x4c] sm:$0xf]
  %v53 = vld [vmem:[%s1 + $0x50] sm:$0xf]
  %v54 = vld [vmem:[%s1 + $0x54] sm:$0xf]
  %v55 = vld [vmem:[%s1 + $0x58] sm:$0xf]
  %v56 = vld [vmem:[%s1 + $0x5c] sm:$0xf]
  %v57 = vld [vmem:[%s1 + $0x60] sm:$0xf]
  %v58 = vld [vmem:[%s1 + $0x64] sm:$0xf]
  %v59 = vld [vmem:[%s1 + $0x68] sm:$0xf]
  %v60 = vld [vmem:[%s1 + $0x6c] sm:$0xf]
  %v61 = vld [vmem:[%s1 + $0x70] sm:$0xf]
  %v62 = vld [vmem:[%s1 + $0x74] sm:$0xf]
  %v63 = vld [vmem:[%s1 + $0x78] sm:$0xf]
  %v64 = vld [vmem:[%s1 + $0x7c] sm:$0xf]
  %v65 = vld [vmem:[%s2] sm:$0x1]
  %v67 = vlaneseq
  %v68 = vshrl.u32 %v67, 7
  %v69 = vsub.s32 0, %v68
  %v70 = vrot.slane %v65, %v69
  %v88 = vunpack.c.l.b16 %v17
  %v89 = vunpack.c.h.b16 %v17
  %v90 = vunpack.c.l.b16 %v18
  %v91 = vunpack.c.h.b16 %v18
  %v92 = vunpack.c.l.b16 %v19
  %v93 = vunpack.c.h.b16 %v19
  %v94 = vunpack.c.l.b16 %v20
  %v95 = vunpack.c.h.b16 %v20
  %v96 = vunpack.c.l.b16 %v21
  %v97 = vunpack.c.h.b16 %v21
  %v98 = vunpack.c.l.b16 %v22
  %v99 = vunpack.c.h.b16 %v22
  %v100 = vunpack.c.l.b16 %v23
  %v101 = vunpack.c.h.b16 %v23
  %v102 = vunpack.c.l.b16 %v24
  %v103 = vunpack.c.h.b16 %v24
  %v104 = vunpack.c.l.b16 %v25
  %v105 = vunpack.c.h.b16 %v25
  %v106 = vunpack.c.l.b16 %v26
  %v107 = vunpack.c.h.b16 %v26
  %v108 = vunpack.c.l.b16 %v27
  %v109 = vunpack.c.h.b16 %v27
  %v110 = vunpack.c.l.b16 %v28
  %v111 = vunpack.c.h.b16 %v28
  %v112 = vunpack.c.l.b16 %v29
  %v113 = vunpack.c.h.b16 %v29
  %v114 = vunpack.c.l.b16 %v30
  %v115 = vunpack.c.h.b16 %v30
  %v116 = vunpack.c.l.b16 %v31
  %v117 = vunpack.c.h.b16 %v31
  %v118 = vunpack.c.l.b16 %v32
  %v119 = vunpack.c.h.b16 %v32
  %v120 = vpack.c.b16 %v90, %v88
  %v121 = vpack.c.b16 %v91, %v89
  %v122 = vpack.c.b16 %v94, %v92
  %v123 = vpack.c.b16 %v95, %v93
  %v124 = vpack.c.b16 %v98, %v96
  %v125 = vpack.c.b16 %v99, %v97
  %v126 = vpack.c.b16 %v102, %v100
  %v127 = vpack.c.b16 %v103, %v101
  %v128 = vpack.c.b16 %v106, %v104
  %v129 = vpack.c.b16 %v107, %v105
  %v130 = vpack.c.b16 %v110, %v108
  %v131 = vpack.c.b16 %v111, %v109
  %v132 = vpack.c.b16 %v114, %v112
  %v133 = vpack.c.b16 %v115, %v113
  %v134 = vpack.c.b16 %v118, %v116
  %v135 = vpack.c.b16 %v119, %v117
  %v184 = vunpack.c.l.b16 %v33
  %v185 = vunpack.c.l.b16 %v34
  %v186 = vunpack.c.l.b16 %v35
  %v187 = vunpack.c.l.b16 %v36
  %v188 = vunpack.c.l.b16 %v37
  %v189 = vunpack.c.l.b16 %v38
  %v190 = vunpack.c.l.b16 %v39
  %v191 = vunpack.c.l.b16 %v40
  %v192 = vunpack.c.l.b16 %v41
  %v193 = vunpack.c.l.b16 %v42
  %v194 = vunpack.c.l.b16 %v43
  %v195 = vunpack.c.l.b16 %v44
  %v196 = vunpack.c.l.b16 %v45
  %v197 = vunpack.c.l.b16 %v46
  %v198 = vunpack.c.l.b16 %v47
  %v199 = vunpack.c.l.b16 %v48
  %v200 = vunpack.c.l.b16 %v49
  %v201 = vunpack.c.l.b16 %v50
  %v202 = vunpack.c.l.b16 %v51
  %v203 = vunpack.c.l.b16 %v52
  %v204 = vunpack.c.l.b16 %v53
  %v205 = vunpack.c.l.b16 %v54
  %v206 = vunpack.c.l.b16 %v55
  %v207 = vunpack.c.l.b16 %v56
  %v208 = vunpack.c.l.b16 %v57
  %v209 = vunpack.c.l.b16 %v58
  %v210 = vunpack.c.l.b16 %v59
  %v211 = vunpack.c.l.b16 %v60
  %v212 = vunpack.c.l.b16 %v61
  %v213 = vunpack.c.l.b16 %v62
  %v214 = vunpack.c.l.b16 %v63
  %v215 = vunpack.c.l.b16 %v64
  %v216 = vpack.c.b16 %v185, %v184
  %v217 = vpack.c.b16 %v187, %v186
  %v218 = vpack.c.b16 %v189, %v188
  %v219 = vpack.c.b16 %v191, %v190
  %v220 = vpack.c.b16 %v193, %v192
  %v221 = vpack.c.b16 %v195, %v194
  %v222 = vpack.c.b16 %v197, %v196
  %v223 = vpack.c.b16 %v199, %v198
  %v224 = vpack.c.b16 %v201, %v200
  %v225 = vpack.c.b16 %v203, %v202
  %v226 = vpack.c.b16 %v205, %v204
  %v227 = vpack.c.b16 %v207, %v206
  %v228 = vpack.c.b16 %v209, %v208
  %v229 = vpack.c.b16 %v211, %v210
  %v230 = vpack.c.b16 %v213, %v212
  %v231 = vpack.c.b16 %v215, %v214
  %248 = vmatprep.subr.bf16.mxu0 0
  %249 = vmatpush1.bf16.msra.mxu0 %v216
  %250 = vmatprep.subr.bf16.mxu0 0
  %251 = vmatpush1.bf16.msra.mxu0 %v217
  %252 = vmatprep.subr.bf16.mxu0 0
  %253 = vmatpush1.bf16.msra.mxu0 %v218
  %254 = vmatprep.subr.bf16.mxu0 0
  %255 = vmatpush1.bf16.msra.mxu0 %v219
  %256 = vmatprep.subr.bf16.mxu0 0
  %257 = vmatpush1.bf16.msra.mxu0 %v220
  %258 = vmatprep.subr.bf16.mxu0 0
  %259 = vmatpush1.bf16.msra.mxu0 %v221
  %260 = vmatprep.subr.bf16.mxu0 0
  %261 = vmatpush1.bf16.msra.mxu0 %v222
  %262 = vmatprep.subr.bf16.mxu0 0
  %263 = vmatpush1.bf16.msra.mxu0 %v223
  %264 = vmatprep.subr.bf16.mxu0 0
  %265 = vmatpush1.bf16.msra.mxu0 %v224
  %266 = vmatprep.subr.bf16.mxu0 0
  %267 = vmatpush1.bf16.msra.mxu0 %v225
  %268 = vmatprep.subr.bf16.mxu0 0
  %269 = vmatpush1.bf16.msra.mxu0 %v226
  %270 = vmatprep.subr.bf16.mxu0 0
  %271 = vmatpush1.bf16.msra.mxu0 %v227
  %272 = vmatprep.subr.bf16.mxu0 0
  %273 = vmatpush1.bf16.msra.mxu0 %v228
  %274 = vmatprep.subr.bf16.mxu0 0
  %275 = vmatpush1.bf16.msra.mxu0 %v229
  %276 = vmatprep.subr.bf16.mxu0 0
  %277 = vmatpush1.bf16.msra.mxu0 %v230
  %278 = vmatprep.subr.bf16.mxu0 0
  %279 = vmatpush1.bf16.msra.mxu0 %v231
  %280 = vmatprep.mubr.bf16.mxu0 %v121
  %281 = vmatmul.mubr.bf16.gmra.mrb[0].mxu0 %v120
  %v282 = vpop.f32.mrb[0].mxu0
  %v283 = vadd.f32 %v70, %v282
  %v284 = vpop.f32.mrb[0].mxu0
  %v285 = vpop.f32.mrb[0].mxu0
  %v286 = vadd.f32 %v70, %v285
  %v287 = vpop.f32.mrb[0].mxu0
  %288 = vmatprep.mubr.bf16.mxu0 %v123
  %289 = vmatmul.mubr.bf16.gmra.mrb[0].mxu0 %v122
  %v290 = vpop.f32.mrb[0].mxu0
  %v291 = vadd.f32 %v70, %v290
  %v292 = vpop.f32.mrb[0].mxu0
  %v293 = vpop.f32.mrb[0].mxu0
  %v294 = vadd.f32 %v70, %v293
  %v295 = vpop.f32.mrb[0].mxu0
  %296 = vmatprep.mubr.bf16.mxu0 %v125
  %297 = vmatmul.mubr.bf16.gmra.mrb[0].mxu0 %v124
  %v298 = vpop.f32.mrb[0].mxu0
  %v299 = vadd.f32 %v70, %v298
  %v300 = vpop.f32.mrb[0].mxu0
  %v301 = vpop.f32.mrb[0].mxu0
  %v302 = vadd.f32 %v70, %v301
  %v303 = vpop.f32.mrb[0].mxu0
  %304 = vmatprep.mubr.bf16.mxu0 %v127
  %305 = vmatmul.mubr.bf16.gmra.mrb[0].mxu0 %v126
  %v306 = vpop.f32.mrb[0].mxu0
  %v307 = vadd.f32 %v70, %v306
  %v308 = vpop.f32.mrb[0].mxu0
  %v309 = vpop.f32.mrb[0].mxu0
  %v310 = vadd.f32 %v70, %v309
  %v311 = vpop.f32.mrb[0].mxu0
  %312 = vmatprep.mubr.bf16.mxu0 %v129
  %313 = vmatmul.mubr.bf16.gmra.mrb[0].mxu0 %v128
  %v314 = vpop.f32.mrb[0].mxu0
  %v315 = vadd.f32 %v70, %v314
  %v316 = vpop.f32.mrb[0].mxu0
  %v317 = vpop.f32.mrb[0].mxu0
  %v318 = vadd.f32 %v70, %v317
  %v319 = vpop.f32.mrb[0].mxu0
  %320 = vmatprep.mubr.bf16.mxu0 %v131
  %321 = vmatmul.mubr.bf16.gmra.mrb[0].mxu0 %v130
  %v322 = vpop.f32.mrb[0].mxu0
  %v323 = vadd.f32 %v70, %v322
  %v324 = vpop.f32.mrb[0].mxu0
  %v325 = vpop.f32.mrb[0].mxu0
  %v326 = vadd.f32 %v70, %v325
  %v327 = vpop.f32.mrb[0].mxu0
  %328 = vmatprep.mubr.bf16.mxu0 %v133
  %329 = vmatmul.mubr.bf16.gmra.mrb[0].mxu0 %v132
  %v330 = vpop.f32.mrb[0].mxu0
  %v331 = vadd.f32 %v70, %v330
  %v332 = vpop.f32.mrb[0].mxu0
  %v333 = vpop.f32.mrb[0].mxu0
  %v334 = vadd.f32 %v70, %v333
  %v335 = vpop.f32.mrb[0].mxu0
  %336 = vmatprep.mubr.bf16.mxu0 %v135
  %337 = vmatmul.mubr.bf16.gmra.mrb[0].mxu0 %v134
  %v338 = vpop.f32.mrb[0].mxu0
  %v339 = vadd.f32 %v70, %v338
  %v340 = vpop.f32.mrb[0].mxu0
  %v341 = vpop.f32.mrb[0].mxu0
  %v342 = vadd.f32 %v70, %v341
  %v343 = vpop.f32.mrb[0].mxu0
  %344 = vdwg.mxu0
  %345 = vst [vmem:[%s3] sm:$0xff] %v283
  %346 = vst [vmem:[%s3 + $0x8] sm:$0xff] %v286
  %347 = vst [vmem:[%s3 + $0x10] sm:$0xff] %v291
  %348 = vst [vmem:[%s3 + $0x18] sm:$0xff] %v294
  %349 = vst [vmem:[%s3 + $0x20] sm:$0xff] %v299
  %350 = vst [vmem:[%s3 + $0x28] sm:$0xff] %v302
  %351 = vst [vmem:[%s3 + $0x30] sm:$0xff] %v307
  %352 = vst [vmem:[%s3 + $0x38] sm:$0xff] %v310
  %353 = vst [vmem:[%s3 + $0x40] sm:$0xff] %v315
  %354 = vst [vmem:[%s3 + $0x48] sm:$0xff] %v318
  %355 = vst [vmem:[%s3 + $0x50] sm:$0xff] %v323
  %356 = vst [vmem:[%s3 + $0x58] sm:$0xff] %v326
  %357 = vst [vmem:[%s3 + $0x60] sm:$0xff] %v331
  %358 = vst [vmem:[%s3 + $0x68] sm:$0xff] %v334
  %359 = vst [vmem:[%s3 + $0x70] sm:$0xff] %v339
  %360 = vst [vmem:[%s3 + $0x78] sm:$0xff] %v342
  %v361 = vadd.f32 %v283, %v286
  %v362 = vadd.f32 %v361, %v291
  %v363 = vadd.f32 %v362, %v294
  %v364 = vadd.f32 %v363, %v299
  %v365 = vadd.f32 %v364, %v302
  %v366 = vadd.f32 %v365, %v307
  %v367 = vadd.f32 %v366, %v310
  %v368 = vadd.f32 %v367, %v315
  %v369 = vadd.f32 %v368, %v318
  %v370 = vadd.f32 %v369, %v323
  %v371 = vadd.f32 %v370, %v326
  %v372 = vadd.f32 %v371, %v331
  %v373 = vadd.f32 %v372, %v334
  %v374 = vadd.f32 %v373, %v339
  %v375 = vadd.f32 %v374, %v342
  %v376 = vrot.slane %v375, 4
  %v377 = vadd.f32 %v375, %v376
  %v378 = vrot.slane %v377, 2
  %v379 = vadd.f32 %v377, %v378
  %v380 = vrot.slane %v379, 1
  %v381 = vadd.f32 %v379, %v380
  %v382 = vmul.f32 %v283, %v283
  %v383 = vmul.f32 %v286, %v286
  %v384 = vmul.f32 %v291, %v291
  %v385 = vmul.f32 %v294, %v294
  %v386 = vmul.f32 %v299, %v299
  %v387 = vmul.f32 %v302, %v302
  %v388 = vmul.f32 %v307, %v307
  %v389 = vmul.f32 %v310, %v310
  %v390 = vmul.f32 %v315, %v315
  %v391 = vmul.f32 %v318, %v318
  %v392 = vmul.f32 %v323, %v323
  %v393 = vmul.f32 %v326, %v326
  %v394 = vmul.f32 %v331, %v331
  %v395 = vmul.f32 %v334, %v334
  %v396 = vmul.f32 %v339, %v339
  %v397 = vmul.f32 %v342, %v342
  %v398 = vadd.f32 %v382, %v383
  %v399 = vadd.f32 %v398, %v384
  %v400 = vadd.f32 %v399, %v385
  %v401 = vadd.f32 %v400, %v386
  %v402 = vadd.f32 %v401, %v387
  %v403 = vadd.f32 %v402, %v388
  %v404 = vadd.f32 %v403, %v389
  %v405 = vadd.f32 %v404, %v390
  %v406 = vadd.f32 %v405, %v391
  %v407 = vadd.f32 %v406, %v392
  %v408 = vadd.f32 %v407, %v393
  %v409 = vadd.f32 %v408, %v394
  %v410 = vadd.f32 %v409, %v395
  %v411 = vadd.f32 %v410, %v396
  %v412 = vadd.f32 %v411, %v397
  %v413 = vrot.slane %v412, 4
  %v414 = vadd.f32 %v412, %v413
  %v415 = vrot.slane %v414, 2
  %v416 = vadd.f32 %v414, %v415
  %v417 = vrot.slane %v416, 1
  %v418 = vadd.f32 %v416, %v417
  %vm419 = vcmask 1040384
  %v420 = vsel %vm419, %v381, %v418
  %vm421 = vcmask 1041408
  %v422 = vsel %vm421, %v420, 0.0
  %423 = vst [vmem:[%s4] sm:$0xff] %v422
  // Predicated region
  $region14: #{_lambda_.8} parent=0 // pred_check
    _
  $region15: #{_lambda_.8} parent=0 // pred_check_branch
    %425 = sbr.rel (0) target = $region17
  $region16: #{_lambda_.8} parent=0 // pred_region
    _
  $region17: #{_lambda_.8} parent=0 // pred_fallthru
    _
  // Predicated region
  $region18: #{_lambda_.8} parent=0 // pred_check
    _
  $region19: #{_lambda_.8} parent=0 // pred_check_branch
    %427 = sbr.rel (0) target = $region21
  $region20: #{_lambda_.8} parent=0 // pred_region
    _
  $region21: #{_lambda_.8} parent=0 // pred_fallthru
    _
  // Predicated region
  $region22: #{_lambda_.8} parent=0 // pred_check
    _
  $region23: #{_lambda_.8} parent=0 // pred_check_branch
    %429 = sbr.rel (0) target = $region25
  $region24: #{_lambda_.8} parent=0 // pred_region
    _
  $region25: #{_lambda_.8} parent=0 // pred_fallthru
    _
  // Predicated region
  $region26: #{_lambda_.8} parent=0 // pred_check
    _
  $region27: #{_lambda_.8} parent=0 // pred_check_branch
    %431 = sbr.rel (0) target = $region29
  $region28: #{_lambda_.8} parent=0 // pred_region
    _
  $region29: #{_lambda_.8} parent=0 // pred_fallthru
    _

</llo_original>
